<compile_context>
chip_gen: v7x
topology: tpu7x:2x2x1
jax: 0.10.0
libtpu: 0.0.40
codegen_flags: <defaults>
</compile_context>

<pallas_src>
import jax
import jax.numpy as jnp
from jax import lax
from jax.experimental import pallas as pl
from jax.experimental.pallas import tpu as pltpu


# ---------------------------------------------------------------------------
# Fused Pallas kernel: time-tiled bi-LSTM "last output" + siamese distance
# ---------------------------------------------------------------------------
def _siamese_lstm_kernel(lmax_ref,                      # SMEM scalar prefetch: max length
                         len_ref, x_ref, xlast_ref,     # per-chunk inputs
                         wxf_ref, whf_ref, bf_ref,      # forward LSTM weights (Wx/Wh bf16, b f32)
                         wxb_ref, bb_ref,               # backward LSTM input weights
                         out_ref,                       # [1, Bc, 1] distances of this chunk
                         gx_scr, h_scr, c_scr, hl_scr, hb_scr):
    B2c, H = h_scr.shape
    Tc = x_ref.shape[0]
    Bc = out_ref.shape[1]
    t_tile = pl.program_id(1)
    n_tiles = pl.num_programs(1)

    # ---- init at the first time tile of this batch chunk ----
    @pl.when(t_tile == 0)
    def _init():
        h_scr[...] = jnp.zeros_like(h_scr)
        c_scr[...] = jnp.zeros_like(c_scr)
        hl_scr[...] = jnp.zeros_like(hl_scr)
        # Backward direction: single reverse step on token L-1 from a zero state
        # (recurrent weights contribute nothing). Hoisted before the recurrence.
        gb = (jnp.dot(xlast_ref[...], wxb_ref[...],
                      preferred_element_type=jnp.float32) + bb_ref[...])
        sb = jax.nn.sigmoid(gb)            # full-vreg EUP
        tb = jnp.tanh(gb)
        i_b = sb[:, 0 * H:1 * H]
        g_b = tb[:, 2 * H:3 * H]
        o_b = sb[:, 3 * H:4 * H]
        hb_scr[...] = o_b * jnp.tanh(i_b * g_b)    # c_prev = 0

    # ---- per-tile recurrence; tiles entirely past max(length) are skipped ----
    @pl.when(t_tile * Tc < lmax_ref[0])
    def _compute():
        # Input projection for the whole tile (off the serial critical path).
        # Static per-step slabs avoid an in-kernel 3D->2D value reshape.
        for tt_s in range(Tc):
            gx_scr[pl.ds(tt_s * B2c, B2c), :] = (
                jnp.dot(x_ref[tt_s], wxf_ref[...],
                        preferred_element_type=jnp.float32) + bf_ref[...])

        wh = whf_ref[...]                  # hoisted: constant across steps
        lm1 = len_ref[...] - 1             # [B2c, 1]
        t0 = t_tile * Tc

        def step(tt, _):
            base = pl.multiple_of(tt * B2c, B2c)
            gates = (gx_scr[pl.ds(base, B2c), :]
                     + jnp.dot(h_scr[...].astype(wh.dtype), wh,
                               preferred_element_type=jnp.float32))
            sg = jax.nn.sigmoid(gates)     # full [B2c, 4H] vreg EUP op
            th = jnp.tanh(gates)
            i = sg[:, 0 * H:1 * H]
            f = sg[:, 1 * H:2 * H]
            g = th[:, 2 * H:3 * H]
            o = sg[:, 3 * H:4 * H]
            c = f * c_scr[...] + i * g
            h = o * jnp.tanh(c)
            c_scr[...] = c
            h_scr[...] = h
            # keep only the hidden state at t == length-1 (packed-sequence gather)
            hl_scr[...] = jnp.where(t0 + tt == lm1, h, hl_scr[...])
            return 0

        # Tile-local unroll only (Tc is small/bounded) -> no giant basic block.
        lax.fori_loop(0, Tc, step, 0, unroll=True)

    # ---- epilogue: siamese energy distance for this chunk ----
    @pl.when(t_tile == n_tiles - 1)
    def _epilogue():
        hl = hl_scr[...]
        hb = hb_scr[...]
        r1l, r2l = hl[:Bc], hl[Bc:]
        r1b, r2b = hb[:Bc], hb[Bc:]
        dl = r1l - r2l
        db = r1b - r2b
        # no lane-dim concat: per-direction sums of squares added before sqrt
        num = jnp.sqrt(jnp.sum(dl * dl, -1, keepdims=True)
                       + jnp.sum(db * db, -1, keepdims=True))
        den = (jnp.sqrt(jnp.sum(r1l * r1l, -1, keepdims=True)
                        + jnp.sum(r1b * r1b, -1, keepdims=True))
               + jnp.sqrt(jnp.sum(r2l * r2l, -1, keepdims=True)
                          + jnp.sum(r2b * r2b, -1, keepdims=True)))
        out_ref[...] = (num / den)[None]   # NOTE: no epsilon, matching PyTorch parity


# ---------------------------------------------------------------------------
# Wrapper
# ---------------------------------------------------------------------------
def siamese_forward(params, sent1, sent2, sent1_lengths, sent2_lengths,
                    *, batch_chunks=2, time_chunk=4):
    emb = params["emb"]
    B, T = sent1.shape
    H = params["wh_f"].shape[0]
    E = emb.shape[1]
    bf16 = jnp.bfloat16

    # batch chunking (parallel grid axis; 2 chunks maps cleanly onto v7x's 2 TCs)
    NB = batch_chunks
    while NB > 1 and (B % NB != 0 or (2 * B // NB) % 8 != 0):
        NB -= 1
    Bc = B // NB
    B2c = 2 * Bc
    N2 = NB * B2c

    Tc = max(1, min(time_chunk, T))
    TT = pl.cdiv(T, Tc)
    T_pad = TT * Tc

    # chunk layout: rows [b*2Bc : b*2Bc+Bc] are sent1 rows of chunk b,
    # the next Bc rows are the matching sent2 rows (weights are shared).
    s1 = sent1.reshape(NB, Bc, T)
    s2 = sent2.reshape(NB, Bc, T)
    sent = jnp.concatenate([s1, s2], axis=1).reshape(N2, T)
    l1 = sent1_lengths.reshape(NB, Bc)
    l2 = sent2_lengths.reshape(NB, Bc)
    lengths = jnp.concatenate([l1, l2], axis=1).reshape(N2).astype(jnp.int32)

    # gather the frozen table straight into the time-major layout the kernel reads
    # (no activation-sized transpose pass); bf16 halves the embedding DMA bytes.
    e_tm = emb[sent.T].astype(bf16)                              # [T, N2, E]
    if T_pad != T:
        e_tm = jnp.pad(e_tm, ((0, T_pad - T), (0, 0), (0, 0)))
    last_tok = sent[jnp.arange(N2), lengths - 1]                 # token at L-1
    x_last = emb[last_tok].astype(bf16)                          # [N2, E]

    len_col = lengths.reshape(N2, 1)
    lmax = jnp.max(lengths).reshape(1)                           # SMEM scalar prefetch

    wx_f = params["wx_f"].astype(bf16)
    wh_f = params["wh_f"].astype(bf16)
    wx_b = params["wx_b"].astype(bf16)
    b_f = params["b_f"]
    b_b = params["b_b"]

    grid_spec = pltpu.PrefetchScalarGridSpec(
        num_scalar_prefetch=1,
        grid=(NB, TT),
        in_specs=[
            pl.BlockSpec((B2c, 1), lambda b, t, lmax: (b, 0)),            # lengths
            pl.BlockSpec((Tc, B2c, E), lambda b, t, lmax: (t, b, 0)),     # embeddings, time tile
            pl.BlockSpec((B2c, E), lambda b, t, lmax: (b, 0)),            # x at L-1
            pl.BlockSpec((E, 4 * H), lambda b, t, lmax: (0, 0)),          # Wx fwd (resident)
            pl.BlockSpec((H, 4 * H), lambda b, t, lmax: (0, 0)),          # Wh fwd (resident)
            pl.BlockSpec((1, 4 * H), lambda b, t, lmax: (0, 0)),          # b fwd
            pl.BlockSpec((E, 4 * H), lambda b, t, lmax: (0, 0)),          # Wx bwd (resident)
            pl.BlockSpec((1, 4 * H), lambda b, t, lmax: (0, 0)),          # b bwd
        ],
        out_specs=pl.BlockSpec((1, Bc, 1), lambda b, t, lmax: (b, 0, 0)),
        scratch_shapes=[
            pltpu.VMEM((Tc * B2c, 4 * H), jnp.float32),   # per-tile input projection
            pltpu.VMEM((B2c, H), jnp.float32),            # h
            pltpu.VMEM((B2c, H), jnp.float32),            # c
            pltpu.VMEM((B2c, H), jnp.float32),            # h at t = L-1
            pltpu.VMEM((B2c, H), jnp.float32),            # backward-direction hidden
        ],
    )

    dist = pl.pallas_call(
        _siamese_lstm_kernel,
        out_shape=jax.ShapeDtypeStruct((NB, Bc, 1), jnp.float32),
        grid_spec=grid_spec,
        compiler_params=pltpu.CompilerParams(
            dimension_semantics=("parallel", "arbitrary"),
            # explicit budget with headroom; small config -> safe on v5e/v6e/v7x.
            vmem_limit_bytes=32 * 1024 * 1024,
        ),
    )(lmax, len_col, e_tm, x_last, wx_f, wh_f, b_f, wx_b, b_b)

    return dist.reshape(B)


# ---------------------------------------------------------------------------
# Deterministic parameter init (PyTorch LSTM-style uniform(-1/sqrt(H), 1/sqrt(H)))
# ---------------------------------------------------------------------------
def init_params(key, vocab_size, embed_size, lstm_size):
    ks = jax.random.split(key, 7)
    s = 1.0 / jnp.sqrt(jnp.float32(lstm_size))

    def u(k, shape):
        return jax.random.uniform(k, shape, jnp.float32, -s, s)

    return dict(
        emb=0.1 * jax.random.normal(ks[0], (vocab_size, embed_size), jnp.float32),
        wx_f=u(ks[1], (embed_size, 4 * lstm_size)),
        wh_f=u(ks[2], (lstm_size, 4 * lstm_size)),
        b_f=u(ks[3], (1, 4 * lstm_size)),          # b_ih + b_hh combined
        wx_b=u(ks[4], (embed_size, 4 * lstm_size)),
        wh_b=u(ks[5], (lstm_size, 4 * lstm_size)),  # unused (zero-state single step)
        b_b=u(ks[6], (1, 4 * lstm_size)),
    )


# ---------------------------------------------------------------------------
# Pure-JAX reference (mirrors the kernel's bf16-operand / f32-accumulate numerics)
# ---------------------------------------------------------------------------
def _ref_forward(params, sent1, sent2, len1, len2):
    bf16 = jnp.bfloat16
    emb = params["emb"]
    wx_f = params["wx_f"].astype(bf16)
    wh_f = params["wh_f"].astype(bf16)
    wx_b = params["wx_b"].astype(bf16)
    b_f = params["b_f"]
    b_b = params["b_b"]
    H = params["wh_f"].shape[0]

    def lstm_last(sent, lengths):
        e = emb[sent].astype(bf16)                       # [B, T, E]
        B = e.shape[0]
        x_tm = jnp.transpose(e, (1, 0, 2))               # [T, B, E]

        def step(carry, x_t):
            h, c = carry
            gates = (jnp.dot(x_t, wx_f, preferred_element_type=jnp.float32) + b_f[0]
                     + jnp.dot(h.astype(bf16), wh_f, preferred_element_type=jnp.float32))
            i = jax.nn.sigmoid(gates[:, :H])
            f = jax.nn.sigmoid(gates[:, H:2 * H])
            g = jnp.tanh(gates[:, 2 * H:3 * H])
            o = jax.nn.sigmoid(gates[:, 3 * H:])
            c = f * c + i * g
            h = o * jnp.tanh(c)
            return (h, c), h

        init = (jnp.zeros((B, H), jnp.float32), jnp.zeros((B, H), jnp.float32))
        _, hs = lax.scan(step, init, x_tm)
        bidx = jnp.arange(B)
        h_f = hs[lengths - 1, bidx]
        # backward direction: single reverse step on token L-1 from zero state
        x_last = e[bidx, lengths - 1]
        gb = jnp.dot(x_last, wx_b, preferred_element_type=jnp.float32) + b_b[0]
        i_b = jax.nn.sigmoid(gb[:, :H])
        g_b = jnp.tanh(gb[:, 2 * H:3 * H])
        o_b = jax.nn.sigmoid(gb[:, 3 * H:])
        h_b = o_b * jnp.tanh(i_b * g_b)
        return jnp.concatenate([h_f, h_b], axis=-1)

    r1 = lstm_last(sent1, len1)
    r2 = lstm_last(sent2, len2)
    num = jnp.sqrt(jnp.sum((r1 - r2) ** 2, axis=-1))
    den = jnp.sqrt(jnp.sum(r1 ** 2, axis=-1)) + jnp.sqrt(jnp.sum(r2 ** 2, axis=-1))
    return num / den


# ---------------------------------------------------------------------------
if __name__ == "__main__":
    # small synthetic config
    VOCAB, EMBED, HID = 50, 32, 32
    B, T = 8, 8

    key = jax.random.PRNGKey(0)
    kp, k1, k2, k3, k4 = jax.random.split(key, 5)

    params = init_params(kp, VOCAB, EMBED, HID)

    sent1 = jax.random.randint(k1, (B, T), 1, VOCAB, dtype=jnp.int32)
    sent2 = jax.random.randint(k2, (B, T), 1, VOCAB, dtype=jnp.int32)
    sent1_lengths = jax.random.randint(k3, (B,), 1, T + 1, dtype=jnp.int32)
    sent2_lengths = jax.random.randint(k4, (B,), 1, T + 1, dtype=jnp.int32)

    fwd = jax.jit(siamese_forward)
    out = fwd(params, sent1, sent2, sent1_lengths, sent2_lengths)
    out = jax.block_until_ready(out)

    ref = _ref_forward(params, sent1, sent2, sent1_lengths, sent2_lengths)
    assert out.shape == (B,)
    assert jnp.allclose(out, ref, atol=1e-3, rtol=1e-3), (out, ref)

    print("KERNEL_OK")
</pallas_src>

<mosaic_0001>
module attributes {stable_mosaic.version = 11 : i64} {
  func.func @_siamese_lstm_kernel(%arg0: i32, %arg1: i32, %arg2: memref<1xi32, #tpu.memory_space<smem>>, %arg3: memref<8x1xi32, #tpu.memory_space<vmem>>, %arg4: memref<4x8x32xbf16, #tpu.memory_space<vmem>>, %arg5: memref<8x32xbf16, #tpu.memory_space<vmem>>, %arg6: memref<32x128xbf16, #tpu.memory_space<vmem>>, %arg7: memref<32x128xbf16, #tpu.memory_space<vmem>>, %arg8: memref<1x128xf32, #tpu.memory_space<vmem>>, %arg9: memref<32x128xbf16, #tpu.memory_space<vmem>>, %arg10: memref<1x128xf32, #tpu.memory_space<vmem>>, %arg11: memref<1x4x1xf32, #tpu.memory_space<vmem>>, %arg12: memref<32x128xf32, #tpu.memory_space<vmem>>, %arg13: memref<8x32xf32, #tpu.memory_space<vmem>>, %arg14: memref<8x32xf32, #tpu.memory_space<vmem>>, %arg15: memref<8x32xf32, #tpu.memory_space<vmem>>, %arg16: memref<8x32xf32, #tpu.memory_space<vmem>>) attributes {dimension_semantics = [#tpu.dimension_semantics<parallel>, #tpu.dimension_semantics<arbitrary>], iteration_bounds = array<i64: 2, 2>, scalar_prefetch = 1 : i64, scratch_operands = 5 : i64, tpu.core_type = #tpu.core_type<tc>, window_params = [{transform_indices = @transform_0, window_bounds = array<i64: 8, 1>}, {transform_indices = @transform_1, window_bounds = array<i64: 4, 8, 32>}, {transform_indices = @transform_2, window_bounds = array<i64: 8, 32>}, {pipeline_mode = #tpu.pipeline_mode<synchronous>, transform_indices = @transform_3, window_bounds = array<i64: 32, 128>}, {pipeline_mode = #tpu.pipeline_mode<synchronous>, transform_indices = @transform_4, window_bounds = array<i64: 32, 128>}, {pipeline_mode = #tpu.pipeline_mode<synchronous>, transform_indices = @transform_5, window_bounds = array<i64: 1, 128>}, {pipeline_mode = #tpu.pipeline_mode<synchronous>, transform_indices = @transform_6, window_bounds = array<i64: 32, 128>}, {pipeline_mode = #tpu.pipeline_mode<synchronous>, transform_indices = @transform_7, window_bounds = array<i64: 1, 128>}, {transform_indices = @transform_8, window_bounds = array<i64: 1, 4, 1>}]} {
    %c0_i32 = arith.constant 0 : i32
    %0 = arith.cmpi eq, %arg1, %c0_i32 : i32
    %1 = arith.extui %0 : i1 to i32
    %c0_i32_0 = arith.constant 0 : i32
    %2 = arith.cmpi ne, %1, %c0_i32_0 : i32
    scf.if %2 {
      %cst = arith.constant 0.000000e+00 : f32
      %11 = vector.broadcast %cst : f32 to vector<8x32xf32>
      %c0_3 = arith.constant 0 : index
      %c0_4 = arith.constant 0 : index
      %12 = vector.load %arg13[%c0_3, %c0_4] : memref<8x32xf32, #tpu.memory_space<vmem>>, vector<8x32xf32>
      tpu.vector_store %arg13[%c0_3, %c0_4], %11 {strides = array<i32>} : memref<8x32xf32, #tpu.memory_space<vmem>>, vector<8x32xf32>,
      %cst_5 = arith.constant 0.000000e+00 : f32
      %13 = vector.broadcast %cst_5 : f32 to vector<8x32xf32>
      %c0_6 = arith.constant 0 : index
      %c0_7 = arith.constant 0 : index
      %14 = vector.load %arg14[%c0_6, %c0_7] : memref<8x32xf32, #tpu.memory_space<vmem>>, vector<8x32xf32>
      tpu.vector_store %arg14[%c0_6, %c0_7], %13 {strides = array<i32>} : memref<8x32xf32, #tpu.memory_space<vmem>>, vector<8x32xf32>,
      %cst_8 = arith.constant 0.000000e+00 : f32
      %15 = vector.broadcast %cst_8 : f32 to vector<8x32xf32>
      %c0_9 = arith.constant 0 : index
      %c0_10 = arith.constant 0 : index
      %16 = vector.load %arg15[%c0_9, %c0_10] : memref<8x32xf32, #tpu.memory_space<vmem>>, vector<8x32xf32>
      tpu.vector_store %arg15[%c0_9, %c0_10], %15 {strides = array<i32>} : memref<8x32xf32, #tpu.memory_space<vmem>>, vector<8x32xf32>,
      %c0_11 = arith.constant 0 : index
      %c0_12 = arith.constant 0 : index
      %17 = vector.load %arg5[%c0_11, %c0_12] : memref<8x32xbf16, #tpu.memory_space<vmem>>, vector<8x32xbf16>
      %c0_13 = arith.constant 0 : index
      %c0_14 = arith.constant 0 : index
      %18 = vector.load %arg9[%c0_13, %c0_14] : memref<32x128xbf16, #tpu.memory_space<vmem>>, vector<32x128xbf16>
      %cst_15 = arith.constant dense<0.000000e+00> : vector<8x128xf32>
      %19 = tpu.matmul %17, %18, %cst_15 {dimension_numbers = #tpu.dot_dimension_numbers<[1], [0], [0], [1], [0, 0, 1, 1], [], []>} : vector<8x32xbf16>, vector<32x128xbf16>, vector<8x128xf32> -> vector<8x128xf32>
      %c0_16 = arith.constant 0 : index
      %c0_17 = arith.constant 0 : index
      %20 = vector.load %arg10[%c0_16, %c0_17] : memref<1x128xf32, #tpu.memory_space<vmem>>, vector<1x128xf32>
      %21 = vector.broadcast %20 : vector<1x128xf32> to vector<8x128xf32>
      %22 = arith.addf %19, %21 : vector<8x128xf32>
      %23 = arith.negf %22 : vector<8x128xf32>
      %24 = math.exp %23 : vector<8x128xf32>
      %cst_18 = arith.constant 1.000000e+00 : f32
      %25 = vector.broadcast %cst_18 : f32 to vector<8x128xf32>
      %26 = arith.addf %25, %24 : vector<8x128xf32>
      %27 = arith.divf %25, %26 : vector<8x128xf32>
      %28 = math.tanh %22 : vector<8x128xf32>
      %29 = vector.extract_strided_slice %27 {offsets = [0, 0], sizes = [8, 32], strides = [1, 1]} : vector<8x128xf32> to vector<8x32xf32>
      %30 = vector.extract_strided_slice %28 {offsets = [0, 64], sizes = [8, 32], strides = [1, 1]} : vector<8x128xf32> to vector<8x32xf32>
      %31 = vector.extract_strided_slice %27 {offsets = [0, 96], sizes = [8, 32], strides = [1, 1]} : vector<8x128xf32> to vector<8x32xf32>
      %32 = arith.mulf %29, %30 : vector<8x32xf32>
      %33 = math.tanh %32 : vector<8x32xf32>
      %34 = arith.mulf %31, %33 : vector<8x32xf32>
      %c0_19 = arith.constant 0 : index
      %c0_20 = arith.constant 0 : index
      %35 = vector.load %arg16[%c0_19, %c0_20] : memref<8x32xf32, #tpu.memory_space<vmem>>, vector<8x32xf32>
      tpu.vector_store %arg16[%c0_19, %c0_20], %34 {strides = array<i32>} : memref<8x32xf32, #tpu.memory_space<vmem>>, vector<8x32xf32>,
    } else {
    }
    %c4_i32 = arith.constant 4 : i32
    %3 = arith.muli %arg1, %c4_i32 : i32
    %c0 = arith.constant 0 : index
    %4 = memref.load %arg2[%c0] : memref<1xi32, #tpu.memory_space<smem>>
    %5 = arith.cmpi slt, %3, %4 : i32
    %6 = arith.extui %5 : i1 to i32
    %c0_i32_1 = arith.constant 0 : i32
    %7 = arith.cmpi ne, %6, %c0_i32_1 : i32
    scf.if %7 {
      %c0_3 = arith.constant 0 : index
      %c0_4 = arith.constant 0 : index
      %c0_5 = arith.constant 0 : index
      %11 = vector.load %arg4[%c0_3, %c0_4, %c0_5] : memref<4x8x32xbf16, #tpu.memory_space<vmem>>, vector<1x8x32xbf16>
      %12 = vector.shape_cast %11 : vector<1x8x32xbf16> to vector<8x32xbf16>
      %c0_6 = arith.constant 0 : index
      %c0_7 = arith.constant 0 : index
      %13 = vector.load %arg6[%c0_6, %c0_7] : memref<32x128xbf16, #tpu.memory_space<vmem>>, vector<32x128xbf16>
      %cst = arith.constant dense<0.000000e+00> : vector<8x128xf32>
      %14 = tpu.matmul %12, %13, %cst {dimension_numbers = #tpu.dot_dimension_numbers<[1], [0], [0], [1], [0, 0, 1, 1], [], []>} : vector<8x32xbf16>, vector<32x128xbf16>, vector<8x128xf32> -> vector<8x128xf32>
      %c0_8 = arith.constant 0 : index
      %c0_9 = arith.constant 0 : index
      %15 = vector.load %arg8[%c0_8, %c0_9] : memref<1x128xf32, #tpu.memory_space<vmem>>, vector<1x128xf32>
      %16 = vector.broadcast %15 : vector<1x128xf32> to vector<8x128xf32>
      %17 = arith.addf %14, %16 : vector<8x128xf32>
      %c0_10 = arith.constant 0 : index
      %c0_11 = arith.constant 0 : index
      %18 = vector.load %arg12[%c0_10, %c0_11] : memref<32x128xf32, #tpu.memory_space<vmem>>, vector<8x128xf32>
      tpu.vector_store %arg12[%c0_10, %c0_11], %17 {strides = array<i32>} : memref<32x128xf32, #tpu.memory_space<vmem>>, vector<8x128xf32>,
      %c1 = arith.constant 1 : index
      %c0_12 = arith.constant 0 : index
      %c0_13 = arith.constant 0 : index
      %19 = vector.load %arg4[%c1, %c0_12, %c0_13] : memref<4x8x32xbf16, #tpu.memory_space<vmem>>, vector<1x8x32xbf16>
      %20 = vector.shape_cast %19 : vector<1x8x32xbf16> to vector<8x32xbf16>
      %c0_14 = arith.constant 0 : index
      %c0_15 = arith.constant 0 : index
      %21 = vector.load %arg6[%c0_14, %c0_15] : memref<32x128xbf16, #tpu.memory_space<vmem>>, vector<32x128xbf16>
      %cst_16 = arith.constant dense<0.000000e+00> : vector<8x128xf32>
      %22 = tpu.matmul %20, %21, %cst_16 {dimension_numbers = #tpu.dot_dimension_numbers<[1], [0], [0], [1], [0, 0, 1, 1], [], []>} : vector<8x32xbf16>, vector<32x128xbf16>, vector<8x128xf32> -> vector<8x128xf32>
      %c0_17 = arith.constant 0 : index
      %c0_18 = arith.constant 0 : index
      %23 = vector.load %arg8[%c0_17, %c0_18] : memref<1x128xf32, #tpu.memory_space<vmem>>, vector<1x128xf32>
      %24 = vector.broadcast %23 : vector<1x128xf32> to vector<8x128xf32>
      %25 = arith.addf %22, %24 : vector<8x128xf32>
      %c8 = arith.constant 8 : index
      %c0_19 = arith.constant 0 : index
      %26 = vector.load %arg12[%c8, %c0_19] : memref<32x128xf32, #tpu.memory_space<vmem>>, vector<8x128xf32>
      tpu.vector_store %arg12[%c8, %c0_19], %25 {strides = array<i32>} : memref<32x128xf32, #tpu.memory_space<vmem>>, vector<8x128xf32>,
      %c2 = arith.constant 2 : index
      %c0_20 = arith.constant 0 : index
      %c0_21 = arith.constant 0 : index
      %27 = vector.load %arg4[%c2, %c0_20, %c0_21] : memref<4x8x32xbf16, #tpu.memory_space<vmem>>, vector<1x8x32xbf16>
      %28 = vector.shape_cast %27 : vector<1x8x32xbf16> to vector<8x32xbf16>
      %c0_22 = arith.constant 0 : index
      %c0_23 = arith.constant 0 : index
      %29 = vector.load %arg6[%c0_22, %c0_23] : memref<32x128xbf16, #tpu.memory_space<vmem>>, vector<32x128xbf16>
      %cst_24 = arith.constant dense<0.000000e+00> : vector<8x128xf32>
      %30 = tpu.matmul %28, %29, %cst_24 {dimension_numbers = #tpu.dot_dimension_numbers<[1], [0], [0], [1], [0, 0, 1, 1], [], []>} : vector<8x32xbf16>, vector<32x128xbf16>, vector<8x128xf32> -> vector<8x128xf32>
      %c0_25 = arith.constant 0 : index
      %c0_26 = arith.constant 0 : index
      %31 = vector.load %arg8[%c0_25, %c0_26] : memref<1x128xf32, #tpu.memory_space<vmem>>, vector<1x128xf32>
      %32 = vector.broadcast %31 : vector<1x128xf32> to vector<8x128xf32>
      %33 = arith.addf %30, %32 : vector<8x128xf32>
      %c16 = arith.constant 16 : index
      %c0_27 = arith.constant 0 : index
      %34 = vector.load %arg12[%c16, %c0_27] : memref<32x128xf32, #tpu.memory_space<vmem>>, vector<8x128xf32>
      tpu.vector_store %arg12[%c16, %c0_27], %33 {strides = array<i32>} : memref<32x128xf32, #tpu.memory_space<vmem>>, vector<8x128xf32>,
      %c3 = arith.constant 3 : index
      %c0_28 = arith.constant 0 : index
      %c0_29 = arith.constant 0 : index
      %35 = vector.load %arg4[%c3, %c0_28, %c0_29] : memref<4x8x32xbf16, #tpu.memory_space<vmem>>, vector<1x8x32xbf16>
      %36 = vector.shape_cast %35 : vector<1x8x32xbf16> to vector<8x32xbf16>
      %c0_30 = arith.constant 0 : index
      %c0_31 = arith.constant 0 : index
      %37 = vector.load %arg6[%c0_30, %c0_31] : memref<32x128xbf16, #tpu.memory_space<vmem>>, vector<32x128xbf16>
      %cst_32 = arith.constant dense<0.000000e+00> : vector<8x128xf32>
      %38 = tpu.matmul %36, %37, %cst_32 {dimension_numbers = #tpu.dot_dimension_numbers<[1], [0], [0], [1], [0, 0, 1, 1], [], []>} : vector<8x32xbf16>, vector<32x128xbf16>, vector<8x128xf32> -> vector<8x128xf32>
      %c0_33 = arith.constant 0 : index
      %c0_34 = arith.constant 0 : index
      %39 = vector.load %arg8[%c0_33, %c0_34] : memref<1x128xf32, #tpu.memory_space<vmem>>, vector<1x128xf32>
      %40 = vector.broadcast %39 : vector<1x128xf32> to vector<8x128xf32>
      %41 = arith.addf %38, %40 : vector<8x128xf32>
      %c24 = arith.constant 24 : index
      %c0_35 = arith.constant 0 : index
      %42 = vector.load %arg12[%c24, %c0_35] : memref<32x128xf32, #tpu.memory_space<vmem>>, vector<8x128xf32>
      tpu.vector_store %arg12[%c24, %c0_35], %41 {strides = array<i32>} : memref<32x128xf32, #tpu.memory_space<vmem>>, vector<8x128xf32>,
      %c0_36 = arith.constant 0 : index
      %c0_37 = arith.constant 0 : index
      %43 = vector.load %arg7[%c0_36, %c0_37] : memref<32x128xbf16, #tpu.memory_space<vmem>>, vector<32x128xbf16>
      %c0_38 = arith.constant 0 : index
      %c0_39 = arith.constant 0 : index
      %44 = vector.load %arg3[%c0_38, %c0_39] : memref<8x1xi32, #tpu.memory_space<vmem>>, vector<8x1xi32>
      %c1_i32_40 = arith.constant 1 : i32
      %45 = vector.broadcast %c1_i32_40 : i32 to vector<8x1xi32>
      %46 = arith.subi %44, %45 : vector<8x1xi32>
      %c4_i32_41 = arith.constant 4 : i32
      %47 = arith.muli %arg1, %c4_i32_41 : i32
      %c0_i32_42 = arith.constant 0 : i32
      %c8_i32 = arith.constant 8 : i32
      %48 = arith.muli %c0_i32_42, %c8_i32 : i32
      %49 = tpu.assume_multiple %48, 8 : i32
      %50 = arith.index_cast %49 : i32 to index
      %c0_43 = arith.constant 0 : index
      %51 = vector.load %arg12[%50, %c0_43] : memref<32x128xf32, #tpu.memory_space<vmem>>, vector<8x128xf32>
      %c0_44 = arith.constant 0 : index
      %c0_45 = arith.constant 0 : index
      %52 = vector.load %arg13[%c0_44, %c0_45] : memref<8x32xf32, #tpu.memory_space<vmem>>, vector<8x32xf32>
      %53 = arith.truncf %52 : vector<8x32xf32> to vector<8x32xbf16>
      %cst_46 = arith.constant dense<0.000000e+00> : vector<8x128xf32>
      %54 = tpu.matmul %53, %43, %cst_46 {dimension_numbers = #tpu.dot_dimension_numbers<[1], [0], [0], [1], [0, 0, 1, 1], [], []>} : vector<8x32xbf16>, vector<32x128xbf16>, vector<8x128xf32> -> vector<8x128xf32>
      %55 = arith.addf %51, %54 : vector<8x128xf32>
      %56 = arith.negf %55 : vector<8x128xf32>
      %57 = math.exp %56 : vector<8x128xf32>
      %cst_47 = arith.constant 1.000000e+00 : f32
      %58 = vector.broadcast %cst_47 : f32 to vector<8x128xf32>
      %59 = arith.addf %58, %57 : vector<8x128xf32>
      %60 = arith.divf %58, %59 : vector<8x128xf32>
      %61 = math.tanh %55 : vector<8x128xf32>
      %62 = vector.extract_strided_slice %60 {offsets = [0, 0], sizes = [8, 32], strides = [1, 1]} : vector<8x128xf32> to vector<8x32xf32>
      %63 = vector.extract_strided_slice %60 {offsets = [0, 32], sizes = [8, 32], strides = [1, 1]} : vector<8x128xf32> to vector<8x32xf32>
      %64 = vector.extract_strided_slice %61 {offsets = [0, 64], sizes = [8, 32], strides = [1, 1]} : vector<8x128xf32> to vector<8x32xf32>
      %65 = vector.extract_strided_slice %60 {offsets = [0, 96], sizes = [8, 32], strides = [1, 1]} : vector<8x128xf32> to vector<8x32xf32>
      %c0_48 = arith.constant 0 : index
      %c0_49 = arith.constant 0 : index
      %66 = vector.load %arg14[%c0_48, %c0_49] : memref<8x32xf32, #tpu.memory_space<vmem>>, vector<8x32xf32>
      %67 = arith.mulf %63, %66 : vector<8x32xf32>
      %68 = arith.mulf %62, %64 : vector<8x32xf32>
      %69 = arith.addf %67, %68 : vector<8x32xf32>
      %70 = math.tanh %69 : vector<8x32xf32>
      %71 = arith.mulf %65, %70 : vector<8x32xf32>
      %c0_50 = arith.constant 0 : index
      %c0_51 = arith.constant 0 : index
      %72 = vector.load %arg14[%c0_50, %c0_51] : memref<8x32xf32, #tpu.memory_space<vmem>>, vector<8x32xf32>
      tpu.vector_store %arg14[%c0_50, %c0_51], %69 {strides = array<i32>} : memref<8x32xf32, #tpu.memory_space<vmem>>, vector<8x32xf32>,
      %c0_52 = arith.constant 0 : index
      %c0_53 = arith.constant 0 : index
      %73 = vector.load %arg13[%c0_52, %c0_53] : memref<8x32xf32, #tpu.memory_space<vmem>>, vector<8x32xf32>
      tpu.vector_store %arg13[%c0_52, %c0_53], %71 {strides = array<i32>} : memref<8x32xf32, #tpu.memory_space<vmem>>, vector<8x32xf32>,
      %74 = arith.addi %47, %c0_i32_42 : i32
      %75 = vector.broadcast %74 : i32 to vector<8x1xi32>
      %76 = arith.cmpi eq, %75, %46 : vector<8x1xi32>
      %c0_54 = arith.constant 0 : index
      %c0_55 = arith.constant 0 : index
      %77 = vector.load %arg15[%c0_54, %c0_55] : memref<8x32xf32, #tpu.memory_space<vmem>>, vector<8x32xf32>
      %78 = vector.shape_cast %76 : vector<8x1xi1> to vector<8x1xi1>
      %79 = vector.broadcast %78 : vector<8x1xi1> to vector<8x32xi1>
      %80 = arith.select %79, %71, %77 : vector<8x32xi1>, vector<8x32xf32>
      %c0_56 = arith.constant 0 : index
      %c0_57 = arith.constant 0 : index
      %81 = vector.load %arg15[%c0_56, %c0_57] : memref<8x32xf32, #tpu.memory_space<vmem>>, vector<8x32xf32>
      tpu.vector_store %arg15[%c0_56, %c0_57], %80 {strides = array<i32>} : memref<8x32xf32, #tpu.memory_space<vmem>>, vector<8x32xf32>,
      %c1_i32_58 = arith.constant 1 : i32
      %c8_i32_59 = arith.constant 8 : i32
      %82 = arith.muli %c1_i32_58, %c8_i32_59 : i32
      %83 = tpu.assume_multiple %82, 8 : i32
      %84 = arith.index_cast %83 : i32 to index
      %c0_60 = arith.constant 0 : index
      %85 = vector.load %arg12[%84, %c0_60] : memref<32x128xf32, #tpu.memory_space<vmem>>, vector<8x128xf32>
      %c0_61 = arith.constant 0 : index
      %c0_62 = arith.constant 0 : index
      %86 = vector.load %arg13[%c0_61, %c0_62] : memref<8x32xf32, #tpu.memory_space<vmem>>, vector<8x32xf32>
      %87 = arith.truncf %86 : vector<8x32xf32> to vector<8x32xbf16>
      %cst_63 = arith.constant dense<0.000000e+00> : vector<8x128xf32>
      %88 = tpu.matmul %87, %43, %cst_63 {dimension_numbers = #tpu.dot_dimension_numbers<[1], [0], [0], [1], [0, 0, 1, 1], [], []>} : vector<8x32xbf16>, vector<32x128xbf16>, vector<8x128xf32> -> vector<8x128xf32>
      %89 = arith.addf %85, %88 : vector<8x128xf32>
      %90 = arith.negf %89 : vector<8x128xf32>
      %91 = math.exp %90 : vector<8x128xf32>
      %cst_64 = arith.constant 1.000000e+00 : f32
      %92 = vector.broadcast %cst_64 : f32 to vector<8x128xf32>
      %93 = arith.addf %92, %91 : vector<8x128xf32>
      %94 = arith.divf %92, %93 : vector<8x128xf32>
      %95 = math.tanh %89 : vector<8x128xf32>
      %96 = vector.extract_strided_slice %94 {offsets = [0, 0], sizes = [8, 32], strides = [1, 1]} : vector<8x128xf32> to vector<8x32xf32>
      %97 = vector.extract_strided_slice %94 {offsets = [0, 32], sizes = [8, 32], strides = [1, 1]} : vector<8x128xf32> to vector<8x32xf32>
      %98 = vector.extract_strided_slice %95 {offsets = [0, 64], sizes = [8, 32], strides = [1, 1]} : vector<8x128xf32> to vector<8x32xf32>
      %99 = vector.extract_strided_slice %94 {offsets = [0, 96], sizes = [8, 32], strides = [1, 1]} : vector<8x128xf32> to vector<8x32xf32>
      %c0_65 = arith.constant 0 : index
      %c0_66 = arith.constant 0 : index
      %100 = vector.load %arg14[%c0_65, %c0_66] : memref<8x32xf32, #tpu.memory_space<vmem>>, vector<8x32xf32>
      %101 = arith.mulf %97, %100 : vector<8x32xf32>
      %102 = arith.mulf %96, %98 : vector<8x32xf32>
      %103 = arith.addf %101, %102 : vector<8x32xf32>
      %104 = math.tanh %103 : vector<8x32xf32>
      %105 = arith.mulf %99, %104 : vector<8x32xf32>
      %c0_67 = arith.constant 0 : index
      %c0_68 = arith.constant 0 : index
      %106 = vector.load %arg14[%c0_67, %c0_68] : memref<8x32xf32, #tpu.memory_space<vmem>>, vector<8x32xf32>
      tpu.vector_store %arg14[%c0_67, %c0_68], %103 {strides = array<i32>} : memref<8x32xf32, #tpu.memory_space<vmem>>, vector<8x32xf32>,
      %c0_69 = arith.constant 0 : index
      %c0_70 = arith.constant 0 : index
      %107 = vector.load %arg13[%c0_69, %c0_70] : memref<8x32xf32, #tpu.memory_space<vmem>>, vector<8x32xf32>
      tpu.vector_store %arg13[%c0_69, %c0_70], %105 {strides = array<i32>} : memref<8x32xf32, #tpu.memory_space<vmem>>, vector<8x32xf32>,
      %108 = arith.addi %47, %c1_i32_58 : i32
      %109 = vector.broadcast %108 : i32 to vector<8x1xi32>
      %110 = arith.cmpi eq, %109, %46 : vector<8x1xi32>
      %c0_71 = arith.constant 0 : index
      %c0_72 = arith.constant 0 : index
      %111 = vector.load %arg15[%c0_71, %c0_72] : memref<8x32xf32, #tpu.memory_space<vmem>>, vector<8x32xf32>
      %112 = vector.shape_cast %110 : vector<8x1xi1> to vector<8x1xi1>
      %113 = vector.broadcast %112 : vector<8x1xi1> to vector<8x32xi1>
      %114 = arith.select %113, %105, %111 : vector<8x32xi1>, vector<8x32xf32>
      %c0_73 = arith.constant 0 : index
      %c0_74 = arith.constant 0 : index
      %115 = vector.load %arg15[%c0_73, %c0_74] : memref<8x32xf32, #tpu.memory_space<vmem>>, vector<8x32xf32>
      tpu.vector_store %arg15[%c0_73, %c0_74], %114 {strides = array<i32>} : memref<8x32xf32, #tpu.memory_space<vmem>>, vector<8x32xf32>,
      %c2_i32 = arith.constant 2 : i32
      %c8_i32_75 = arith.constant 8 : i32
      %116 = arith.muli %c2_i32, %c8_i32_75 : i32
      %117 = tpu.assume_multiple %116, 8 : i32
      %118 = arith.index_cast %117 : i32 to index
      %c0_76 = arith.constant 0 : index
      %119 = vector.load %arg12[%118, %c0_76] : memref<32x128xf32, #tpu.memory_space<vmem>>, vector<8x128xf32>
      %c0_77 = arith.constant 0 : index
      %c0_78 = arith.constant 0 : index
      %120 = vector.load %arg13[%c0_77, %c0_78] : memref<8x32xf32, #tpu.memory_space<vmem>>, vector<8x32xf32>
      %121 = arith.truncf %120 : vector<8x32xf32> to vector<8x32xbf16>
      %cst_79 = arith.constant dense<0.000000e+00> : vector<8x128xf32>
      %122 = tpu.matmul %121, %43, %cst_79 {dimension_numbers = #tpu.dot_dimension_numbers<[1], [0], [0], [1], [0, 0, 1, 1], [], []>} : vector<8x32xbf16>, vector<32x128xbf16>, vector<8x128xf32> -> vector<8x128xf32>
      %123 = arith.addf %119, %122 : vector<8x128xf32>
      %124 = arith.negf %123 : vector<8x128xf32>
      %125 = math.exp %124 : vector<8x128xf32>
      %cst_80 = arith.constant 1.000000e+00 : f32
      %126 = vector.broadcast %cst_80 : f32 to vector<8x128xf32>
      %127 = arith.addf %126, %125 : vector<8x128xf32>
      %128 = arith.divf %126, %127 : vector<8x128xf32>
      %129 = math.tanh %123 : vector<8x128xf32>
      %130 = vector.extract_strided_slice %128 {offsets = [0, 0], sizes = [8, 32], strides = [1, 1]} : vector<8x128xf32> to vector<8x32xf32>
      %131 = vector.extract_strided_slice %128 {offsets = [0, 32], sizes = [8, 32], strides = [1, 1]} : vector<8x128xf32> to vector<8x32xf32>
      %132 = vector.extract_strided_slice %129 {offsets = [0, 64], sizes = [8, 32], strides = [1, 1]} : vector<8x128xf32> to vector<8x32xf32>
      %133 = vector.extract_strided_slice %128 {offsets = [0, 96], sizes = [8, 32], strides = [1, 1]} : vector<8x128xf32> to vector<8x32xf32>
      %c0_81 = arith.constant 0 : index
      %c0_82 = arith.constant 0 : index
      %134 = vector.load %arg14[%c0_81, %c0_82] : memref<8x32xf32, #tpu.memory_space<vmem>>, vector<8x32xf32>
      %135 = arith.mulf %131, %134 : vector<8x32xf32>
      %136 = arith.mulf %130, %132 : vector<8x32xf32>
      %137 = arith.addf %135, %136 : vector<8x32xf32>
      %138 = math.tanh %137 : vector<8x32xf32>
      %139 = arith.mulf %133, %138 : vector<8x32xf32>
      %c0_83 = arith.constant 0 : index
      %c0_84 = arith.constant 0 : index
      %140 = vector.load %arg14[%c0_83, %c0_84] : memref<8x32xf32, #tpu.memory_space<vmem>>, vector<8x32xf32>
      tpu.vector_store %arg14[%c0_83, %c0_84], %137 {strides = array<i32>} : memref<8x32xf32, #tpu.memory_space<vmem>>, vector<8x32xf32>,
      %c0_85 = arith.constant 0 : index
      %c0_86 = arith.constant 0 : index
      %141 = vector.load %arg13[%c0_85, %c0_86] : memref<8x32xf32, #tpu.memory_space<vmem>>, vector<8x32xf32>
      tpu.vector_store %arg13[%c0_85, %c0_86], %139 {strides = array<i32>} : memref<8x32xf32, #tpu.memory_space<vmem>>, vector<8x32xf32>,
      %142 = arith.addi %47, %c2_i32 : i32
      %143 = vector.broadcast %142 : i32 to vector<8x1xi32>
      %144 = arith.cmpi eq, %143, %46 : vector<8x1xi32>
      %c0_87 = arith.constant 0 : index
      %c0_88 = arith.constant 0 : index
      %145 = vector.load %arg15[%c0_87, %c0_88] : memref<8x32xf32, #tpu.memory_space<vmem>>, vector<8x32xf32>
      %146 = vector.shape_cast %144 : vector<8x1xi1> to vector<8x1xi1>
      %147 = vector.broadcast %146 : vector<8x1xi1> to vector<8x32xi1>
      %148 = arith.select %147, %139, %145 : vector<8x32xi1>, vector<8x32xf32>
      %c0_89 = arith.constant 0 : index
      %c0_90 = arith.constant 0 : index
      %149 = vector.load %arg15[%c0_89, %c0_90] : memref<8x32xf32, #tpu.memory_space<vmem>>, vector<8x32xf32>
      tpu.vector_store %arg15[%c0_89, %c0_90], %148 {strides = array<i32>} : memref<8x32xf32, #tpu.memory_space<vmem>>, vector<8x32xf32>,
      %c3_i32 = arith.constant 3 : i32
      %c8_i32_91 = arith.constant 8 : i32
      %150 = arith.muli %c3_i32, %c8_i32_91 : i32
      %151 = tpu.assume_multiple %150, 8 : i32
      %152 = arith.index_cast %151 : i32 to index
      %c0_92 = arith.constant 0 : index
      %153 = vector.load %arg12[%152, %c0_92] : memref<32x128xf32, #tpu.memory_space<vmem>>, vector<8x128xf32>
      %c0_93 = arith.constant 0 : index
      %c0_94 = arith.constant 0 : index
      %154 = vector.load %arg13[%c0_93, %c0_94] : memref<8x32xf32, #tpu.memory_space<vmem>>, vector<8x32xf32>
      %155 = arith.truncf %154 : vector<8x32xf32> to vector<8x32xbf16>
      %cst_95 = arith.constant dense<0.000000e+00> : vector<8x128xf32>
      %156 = tpu.matmul %155, %43, %cst_95 {dimension_numbers = #tpu.dot_dimension_numbers<[1], [0], [0], [1], [0, 0, 1, 1], [], []>} : vector<8x32xbf16>, vector<32x128xbf16>, vector<8x128xf32> -> vector<8x128xf32>
      %157 = arith.addf %153, %156 : vector<8x128xf32>
      %158 = arith.negf %157 : vector<8x128xf32>
      %159 = math.exp %158 : vector<8x128xf32>
      %cst_96 = arith.constant 1.000000e+00 : f32
      %160 = vector.broadcast %cst_96 : f32 to vector<8x128xf32>
      %161 = arith.addf %160, %159 : vector<8x128xf32>
      %162 = arith.divf %160, %161 : vector<8x128xf32>
      %163 = math.tanh %157 : vector<8x128xf32>
      %164 = vector.extract_strided_slice %162 {offsets = [0, 0], sizes = [8, 32], strides = [1, 1]} : vector<8x128xf32> to vector<8x32xf32>
      %165 = vector.extract_strided_slice %162 {offsets = [0, 32], sizes = [8, 32], strides = [1, 1]} : vector<8x128xf32> to vector<8x32xf32>
      %166 = vector.extract_strided_slice %163 {offsets = [0, 64], sizes = [8, 32], strides = [1, 1]} : vector<8x128xf32> to vector<8x32xf32>
      %167 = vector.extract_strided_slice %162 {offsets = [0, 96], sizes = [8, 32], strides = [1, 1]} : vector<8x128xf32> to vector<8x32xf32>
      %c0_97 = arith.constant 0 : index
      %c0_98 = arith.constant 0 : index
      %168 = vector.load %arg14[%c0_97, %c0_98] : memref<8x32xf32, #tpu.memory_space<vmem>>, vector<8x32xf32>
      %169 = arith.mulf %165, %168 : vector<8x32xf32>
      %170 = arith.mulf %164, %166 : vector<8x32xf32>
      %171 = arith.addf %169, %170 : vector<8x32xf32>
      %172 = math.tanh %171 : vector<8x32xf32>
      %173 = arith.mulf %167, %172 : vector<8x32xf32>
      %c0_99 = arith.constant 0 : index
      %c0_100 = arith.constant 0 : index
      %174 = vector.load %arg14[%c0_99, %c0_100] : memref<8x32xf32, #tpu.memory_space<vmem>>, vector<8x32xf32>
      tpu.vector_store %arg14[%c0_99, %c0_100], %171 {strides = array<i32>} : memref<8x32xf32, #tpu.memory_space<vmem>>, vector<8x32xf32>,
      %c0_101 = arith.constant 0 : index
      %c0_102 = arith.constant 0 : index
      %175 = vector.load %arg13[%c0_101, %c0_102] : memref<8x32xf32, #tpu.memory_space<vmem>>, vector<8x32xf32>
      tpu.vector_store %arg13[%c0_101, %c0_102], %173 {strides = array<i32>} : memref<8x32xf32, #tpu.memory_space<vmem>>, vector<8x32xf32>,
      %176 = arith.addi %47, %c3_i32 : i32
      %177 = vector.broadcast %176 : i32 to vector<8x1xi32>
      %178 = arith.cmpi eq, %177, %46 : vector<8x1xi32>
      %c0_103 = arith.constant 0 : index
      %c0_104 = arith.constant 0 : index
      %179 = vector.load %arg15[%c0_103, %c0_104] : memref<8x32xf32, #tpu.memory_space<vmem>>, vector<8x32xf32>
      %180 = vector.shape_cast %178 : vector<8x1xi1> to vector<8x1xi1>
      %181 = vector.broadcast %180 : vector<8x1xi1> to vector<8x32xi1>
      %182 = arith.select %181, %173, %179 : vector<8x32xi1>, vector<8x32xf32>
      %c0_105 = arith.constant 0 : index
      %c0_106 = arith.constant 0 : index
      %183 = vector.load %arg15[%c0_105, %c0_106] : memref<8x32xf32, #tpu.memory_space<vmem>>, vector<8x32xf32>
      tpu.vector_store %arg15[%c0_105, %c0_106], %182 {strides = array<i32>} : memref<8x32xf32, #tpu.memory_space<vmem>>, vector<8x32xf32>,
      %c4_i32_107 = arith.constant 4 : i32
    } else {
    }
    %c1_i32 = arith.constant 1 : i32
    %8 = arith.cmpi eq, %arg1, %c1_i32 : i32
    %9 = arith.extui %8 : i1 to i32
    %c0_i32_2 = arith.constant 0 : i32
    %10 = arith.cmpi ne, %9, %c0_i32_2 : i32
    scf.if %10 {
      %c0_3 = arith.constant 0 : index
      %c0_4 = arith.constant 0 : index
      %11 = vector.load %arg15[%c0_3, %c0_4] : memref<8x32xf32, #tpu.memory_space<vmem>>, vector<8x32xf32>
      %c0_5 = arith.constant 0 : index
      %c0_6 = arith.constant 0 : index
      %12 = vector.load %arg16[%c0_5, %c0_6] : memref<8x32xf32, #tpu.memory_space<vmem>>, vector<8x32xf32>
      %13 = vector.extract_strided_slice %11 {offsets = [0, 0], sizes = [4, 32], strides = [1, 1]} : vector<8x32xf32> to vector<4x32xf32>
      %14 = vector.extract_strided_slice %11 {offsets = [4, 0], sizes = [4, 32], strides = [1, 1]} : vector<8x32xf32> to vector<4x32xf32>
      %15 = vector.extract_strided_slice %12 {offsets = [0, 0], sizes = [4, 32], strides = [1, 1]} : vector<8x32xf32> to vector<4x32xf32>
      %16 = vector.extract_strided_slice %12 {offsets = [4, 0], sizes = [4, 32], strides = [1, 1]} : vector<8x32xf32> to vector<4x32xf32>
      %17 = arith.subf %13, %14 : vector<4x32xf32>
      %18 = arith.subf %15, %16 : vector<4x32xf32>
      %19 = arith.mulf %17, %17 : vector<4x32xf32>
      %cst = arith.constant dense<0.000000e+00> : vector<4xf32>
      %20 = vector.multi_reduction <add>, %19, %cst [1] : vector<4x32xf32> to vector<4xf32>
      %21 = vector.shape_cast %20 : vector<4xf32> to vector<4x1xf32>
      %22 = arith.mulf %18, %18 : vector<4x32xf32>
      %cst_7 = arith.constant dense<0.000000e+00> : vector<4xf32>
      %23 = vector.multi_reduction <add>, %22, %cst_7 [1] : vector<4x32xf32> to vector<4xf32>
      %24 = vector.shape_cast %23 : vector<4xf32> to vector<4x1xf32>
      %25 = arith.addf %21, %24 : vector<4x1xf32>
      %26 = math.sqrt %25 : vector<4x1xf32>
      %27 = arith.mulf %13, %13 : vector<4x32xf32>
      %cst_8 = arith.constant dense<0.000000e+00> : vector<4xf32>
      %28 = vector.multi_reduction <add>, %27, %cst_8 [1] : vector<4x32xf32> to vector<4xf32>
      %29 = vector.shape_cast %28 : vector<4xf32> to vector<4x1xf32>
      %30 = arith.mulf %15, %15 : vector<4x32xf32>
      %cst_9 = arith.constant dense<0.000000e+00> : vector<4xf32>
      %31 = vector.multi_reduction <add>, %30, %cst_9 [1] : vector<4x32xf32> to vector<4xf32>
      %32 = vector.shape_cast %31 : vector<4xf32> to vector<4x1xf32>
      %33 = arith.addf %29, %32 : vector<4x1xf32>
      %34 = math.sqrt %33 : vector<4x1xf32>
      %35 = arith.mulf %14, %14 : vector<4x32xf32>
      %cst_10 = arith.constant dense<0.000000e+00> : vector<4xf32>
      %36 = vector.multi_reduction <add>, %35, %cst_10 [1] : vector<4x32xf32> to vector<4xf32>
      %37 = vector.shape_cast %36 : vector<4xf32> to vector<4x1xf32>
      %38 = arith.mulf %16, %16 : vector<4x32xf32>
      %cst_11 = arith.constant dense<0.000000e+00> : vector<4xf32>
      %39 = vector.multi_reduction <add>, %38, %cst_11 [1] : vector<4x32xf32> to vector<4xf32>
      %40 = vector.shape_cast %39 : vector<4xf32> to vector<4x1xf32>
      %41 = arith.addf %37, %40 : vector<4x1xf32>
      %42 = math.sqrt %41 : vector<4x1xf32>
      %43 = arith.addf %34, %42 : vector<4x1xf32>
      %44 = arith.divf %26, %43 : vector<4x1xf32>
      %45 = vector.shape_cast %44 : vector<4x1xf32> to vector<1x4x1xf32>
      %c0_12 = arith.constant 0 : index
      %c0_13 = arith.constant 0 : index
      %c0_14 = arith.constant 0 : index
      %46 = vector.load %arg11[%c0_12, %c0_13, %c0_14] : memref<1x4x1xf32, #tpu.memory_space<vmem>>, vector<1x4x1xf32>
      tpu.vector_store %arg11[%c0_12, %c0_13, %c0_14], %45 {strides = array<i32>} : memref<1x4x1xf32, #tpu.memory_space<vmem>>, vector<1x4x1xf32>,
    } else {
    }
    return
  }
  func.func @transform_0(%arg0: i32, %arg1: i32, %arg2: memref<1xi32, #tpu.memory_space<smem>>) -> (i32, i32) {
    %c0_i32 = arith.constant 0 : i32
    %c0_i32_0 = arith.constant 0 : i32
    return %arg0, %c0_i32 : i32, i32
  }
  func.func @transform_1(%arg0: i32, %arg1: i32, %arg2: memref<1xi32, #tpu.memory_space<smem>>) -> (i32, i32, i32) {
    %c0_i32 = arith.constant 0 : i32
    %c0_i32_0 = arith.constant 0 : i32
    return %arg1, %arg0, %c0_i32 : i32, i32, i32
  }
  func.func @transform_2(%arg0: i32, %arg1: i32, %arg2: memref<1xi32, #tpu.memory_space<smem>>) -> (i32, i32) {
    %c0_i32 = arith.constant 0 : i32
    %c0_i32_0 = arith.constant 0 : i32
    return %arg0, %c0_i32 : i32, i32
  }
  func.func @transform_3(%arg0: i32, %arg1: i32, %arg2: memref<1xi32, #tpu.memory_space<smem>>) -> (i32, i32) {
    %c0_i32 = arith.constant 0 : i32
    %c0_i32_0 = arith.constant 0 : i32
    %c0_i32_1 = arith.constant 0 : i32
    return %c0_i32, %c0_i32_0 : i32, i32
  }
  func.func @transform_4(%arg0: i32, %arg1: i32, %arg2: memref<1xi32, #tpu.memory_space<smem>>) -> (i32, i32) {
    %c0_i32 = arith.constant 0 : i32
    %c0_i32_0 = arith.constant 0 : i32
    %c0_i32_1 = arith.constant 0 : i32
    return %c0_i32, %c0_i32_0 : i32, i32
  }
  func.func @transform_5(%arg0: i32, %arg1: i32, %arg2: memref<1xi32, #tpu.memory_space<smem>>) -> (i32, i32) {
    %c0_i32 = arith.constant 0 : i32
    %c0_i32_0 = arith.constant 0 : i32
    %c0_i32_1 = arith.constant 0 : i32
    return %c0_i32, %c0_i32_0 : i32, i32
  }
  func.func @transform_6(%arg0: i32, %arg1: i32, %arg2: memref<1xi32, #tpu.memory_space<smem>>) -> (i32, i32) {
    %c0_i32 = arith.constant 0 : i32
    %c0_i32_0 = arith.constant 0 : i32
    %c0_i32_1 = arith.constant 0 : i32
    return %c0_i32, %c0_i32_0 : i32, i32
  }
  func.func @transform_7(%arg0: i32, %arg1: i32, %arg2: memref<1xi32, #tpu.memory_space<smem>>) -> (i32, i32) {
    %c0_i32 = arith.constant 0 : i32
    %c0_i32_0 = arith.constant 0 : i32
    %c0_i32_1 = arith.constant 0 : i32
    return %c0_i32, %c0_i32_0 : i32, i32
  }
  func.func @transform_8(%arg0: i32, %arg1: i32, %arg2: memref<1xi32, #tpu.memory_space<smem>>) -> (i32, i32, i32) {
    %c0_i32 = arith.constant 0 : i32
    %c0_i32_0 = arith.constant 0 : i32
    %c0_i32_1 = arith.constant 0 : i32
    return %arg0, %c0_i32, %c0_i32_0 : i32, i32, i32
  }
}

</mosaic_0001>

<llo_original>
// kernel: siamese_forward.1
$region0: #{siamese_forward.1}
  #allocation0 [shape = 'u32[]', space=smem, size = 0x4, offset = 0x4, fixed_abs, tag = 'smem constant byte address 0x4 - core index']
  #allocation1 [shape = 'u32[144,128]{1,0:T(1,128)}', space=vmem, size = 0x12000, scoped, tag = 'internal scratch']
  #allocation2 [shape = 'f32[32,128]{1,0:T(8,128)}', space=vmem, size = 0x4000, scoped, tag = 'scratch operand']
  #allocation3 [shape = 'f32[8,32]{1,0:T(8,128)}', space=vmem, size = 0x1000, scoped, tag = 'scratch operand']
  #allocation4 [shape = 'f32[8,32]{1,0:T(8,128)}', space=vmem, size = 0x1000, scoped, tag = 'scratch operand']
  #allocation5 [shape = 'f32[8,32]{1,0:T(8,128)}', space=vmem, size = 0x1000, scoped, tag = 'scratch operand']
  #allocation6 [shape = 'f32[8,32]{1,0:T(8,128)}', space=vmem, size = 0x1000, scoped, tag = 'scratch operand']
  #allocation7 [shape = 's32[1]{0}', space=sflag, size = 0x4, scoped, tag = 'scoped memory for siamese_forward.1']
  #allocation8 [shape = 's32[1]{0:T(128)S(6)}', space=smem, size = 0x200, scoped, tag = 'prefetched SMEM operand 0']
  %s0 = inlined_call_operand.<no memory space> [shape: s32[1], index: 0, kind: input, shape index: {}]
  %s1 = inlined_call_operand.vmem [shape: s32[16,1], index: 1, kind: input, shape index: {}]
  %s2 = inlined_call_operand.vmem [shape: bf16[8,16,32], index: 2, kind: input, shape index: {}]
  %s3 = inlined_call_operand.vmem [shape: bf16[16,32], index: 3, kind: input, shape index: {}]
  %s4 = inlined_call_operand.vmem [shape: bf16[32,128], index: 4, kind: input, shape index: {}]
  %s5 = inlined_call_operand.vmem [shape: bf16[32,128], index: 5, kind: input, shape index: {}]
  %s6 = inlined_call_operand.vmem [shape: f32[1,128], index: 6, kind: input, shape index: {}]
  %s7 = inlined_call_operand.vmem [shape: bf16[32,128], index: 7, kind: input, shape index: {}]
  %s8 = inlined_call_operand.vmem [shape: f32[1,128], index: 8, kind: input, shape index: {}]
  %s9 = inlined_call_operand.vmem [shape: f32[2,4,1], index: 9, kind: output, shape index: {}]
  %s10 = sld [smem:[#allocation0]]
  $region118: #{siamese_forward.1} parent=0
    _
  %s12 = ssub.s32 1, %s10
  %s13 = scalar_select 0, %s12, %s10
  %14 = sst [smem:[#allocation8]] %s0
  $region1: #{siamese_forward.1} parent=0
    #allocation9 [shape = 'u8[16384]{0}', space=vmem, size = 0x4000, scoped, tag = 'input window, operand 2']
    loop: start=0, step=1, limit=6
    $region2: #{siamese_forward.1} parent=1 // loop_pre_header
      _
    $region3: #{siamese_forward.1} parent=1 // loop_header
      %s16 = sphi 0, %s20
      %p17 = scmp.ge.s32.totalorder %s16, 6
      %s23 = sphi 0, %s35
      %s24 = sphi 0, %s31
      %s25 = sphi 0, %s23
      %s26 = sphi 0, %s24
      %s27 = sphi 0, %s25
      %s28 = sphi 0, %s26
      %s38 = sphi 0, %s40
      %s41 = sphi 0, %s38
      %s42 = sphi 0, %s41
      %s58 = sphi 0, %s42
      %s66 = sphi 0, %s68
      %s69 = sphi 0, %s66
      %s70 = sphi 0, %s69
      %s86 = sphi 0, %s70
      %s92 = sphi 0, %s94
      %s95 = sphi 0, %s92
      %s96 = sphi 0, %s95
      %s112 = sphi 0, %s96
      %s116 = sphi 0, %s116
      %s118 = sphi 0, %s116
      %s119 = sphi 0, %s118
      %s133 = sphi 0, %s119
      %s137 = sphi 0, %s137
      %s139 = sphi 0, %s137
      %s140 = sphi 0, %s139
      %s154 = sphi 0, %s140
      %s158 = sphi 0, %s158
      %s160 = sphi 0, %s158
      %s161 = sphi 0, %s160
      %s175 = sphi 0, %s161
      %s179 = sphi 0, %s179
      %s181 = sphi 0, %s179
      %s182 = sphi 0, %s181
      %s196 = sphi 0, %s182
      %s200 = sphi 0, %s200
      %s202 = sphi 0, %s200
      %s203 = sphi 0, %s202
      %s217 = sphi 0, %s203
      %s223 = sphi 0, %s225
      %s226 = sphi 0, %s223
      %s227 = sphi 0, %s226
      %s243 = sphi 0, %s227
    $region4: #{siamese_forward.1} parent=1 // loop_header_branch
      %19 = sbr.rel (%p17) target = $region8
    $region5: #{siamese_forward.1} parent=1 // loop_body
      %s21 = ssub.s32 %s16, 1
      %s22 = ssub.s32 %s16, 2
      %s29 = sadd.s32 1, %s24
      %p30 = scmp.ge.s32.totalorder %s29, 2
      %s31 = scalar_select %p30, 0, %s29
      %s32 = sadd.s32 1, %s23
      %s33 = scalar_select %p30, %s32, %s23
      %p34 = scmp.ge.s32.totalorder %s33, 2
      %s35 = scalar_select %p34, 0, %s33
      %s36 = ssub.s32 %s23, %s35
      %p37 = scmp.eq.s32.totalorder %s36, 0
      %s39 = sadd.s32 %s38, 1
      %s40 = scalar_select %p37, %s38, %s39
      %p43 = pneg %p37
      %p44 = scmp.eq.s32.totalorder %s16, 3
      %p45 = por %p43, %p44
      %p46 = scmp.ne.s32.totalorder %s38, %s41
      %p47 = scmp.eq.s32.totalorder %s16, 0
      %p48 = por %p46, %p47
      %p49 = scmp.ne.s32.totalorder %s38, %s41
      %p50 = scmp.eq.s32.totalorder %s21, 3
      %p51 = por %p49, %p50
      %p52 = scmp.ne.s32.totalorder %s41, %s42
      %p53 = scmp.eq.s32.totalorder %s21, 0
      %p54 = por %p52, %p53
      %p55 = scmp.ne.s32.totalorder %s41, %s42
      %p56 = scmp.eq.s32.totalorder %s22, 3
      %p57 = por %p55, %p56
      %p59 = scmp.ne.s32.totalorder %s42, %s58
      %p60 = scmp.eq.s32.totalorder %s22, 0
      %p61 = por %p59, %p60
      %s62 = ssub.s32 %s24, %s31
      %s63 = ssub.s32 %s23, %s35
      %s64 = sor.u32 %s62, %s63
      %p65 = scmp.eq.s32.totalorder %s64, 0
      %s67 = sadd.s32 %s66, 1
      %s68 = scalar_select %p65, %s66, %s67
      %p71 = pneg %p65
      %p72 = scmp.eq.s32.totalorder %s16, 3
      %p73 = por %p71, %p72
      %p74 = scmp.ne.s32.totalorder %s66, %s69
      %p75 = scmp.eq.s32.totalorder %s16, 0
      %p76 = por %p74, %p75
      %p77 = scmp.ne.s32.totalorder %s66, %s69
      %p78 = scmp.eq.s32.totalorder %s21, 3
      %p79 = por %p77, %p78
      %p80 = scmp.ne.s32.totalorder %s69, %s70
      %p81 = scmp.eq.s32.totalorder %s21, 0
      %p82 = por %p80, %p81
      %p83 = scmp.ne.s32.totalorder %s69, %s70
      %p84 = scmp.eq.s32.totalorder %s22, 3
      %p85 = por %p83, %p84
      %p87 = scmp.ne.s32.totalorder %s70, %s86
      %p88 = scmp.eq.s32.totalorder %s22, 0
      %p89 = por %p87, %p88
      %s90 = ssub.s32 %s23, %s35
      %p91 = scmp.eq.s32.totalorder %s90, 0
      %s93 = sadd.s32 %s92, 1
      %s94 = scalar_select %p91, %s92, %s93
      %p97 = pneg %p91
      %p98 = scmp.eq.s32.totalorder %s16, 3
      %p99 = por %p97, %p98
      %p100 = scmp.ne.s32.totalorder %s92, %s95
      %p101 = scmp.eq.s32.totalorder %s16, 0
      %p102 = por %p100, %p101
      %p103 = scmp.ne.s32.totalorder %s92, %s95
      %p104 = scmp.eq.s32.totalorder %s21, 3
      %p105 = por %p103, %p104
      %p106 = scmp.ne.s32.totalorder %s95, %s96
      %p107 = scmp.eq.s32.totalorder %s21, 0
      %p108 = por %p106, %p107
      %p109 = scmp.ne.s32.totalorder %s95, %s96
      %p110 = scmp.eq.s32.totalorder %s22, 3
      %p111 = por %p109, %p110
      %p113 = scmp.ne.s32.totalorder %s96, %s112
      %p114 = scmp.eq.s32.totalorder %s22, 0
      %p115 = por %p113, %p114
      %s117 = sadd.s32 %s116, 1
      %p120 = scmp.eq.s32.totalorder %s16, 3
      %p121 = scmp.ne.s32.totalorder %s116, %s118
      %p122 = scmp.eq.s32.totalorder %s16, 0
      %p123 = por %p121, %p122
      %p124 = scmp.ne.s32.totalorder %s116, %s118
      %p125 = scmp.eq.s32.totalorder %s21, 3
      %p126 = por %p124, %p125
      %p127 = scmp.ne.s32.totalorder %s118, %s119
      %p128 = scmp.eq.s32.totalorder %s21, 0
      %p129 = por %p127, %p128
      %p130 = scmp.ne.s32.totalorder %s118, %s119
      %p131 = scmp.eq.s32.totalorder %s22, 3
      %p132 = por %p130, %p131
      %p134 = scmp.ne.s32.totalorder %s119, %s133
      %p135 = scmp.eq.s32.totalorder %s22, 0
      %p136 = por %p134, %p135
      %s138 = sadd.s32 %s137, 1
      %p141 = scmp.eq.s32.totalorder %s16, 3
      %p142 = scmp.ne.s32.totalorder %s137, %s139
      %p143 = scmp.eq.s32.totalorder %s16, 0
      %p144 = por %p142, %p143
      %p145 = scmp.ne.s32.totalorder %s137, %s139
      %p146 = scmp.eq.s32.totalorder %s21, 3
      %p147 = por %p145, %p146
      %p148 = scmp.ne.s32.totalorder %s139, %s140
      %p149 = scmp.eq.s32.totalorder %s21, 0
      %p150 = por %p148, %p149
      %p151 = scmp.ne.s32.totalorder %s139, %s140
      %p152 = scmp.eq.s32.totalorder %s22, 3
      %p153 = por %p151, %p152
      %p155 = scmp.ne.s32.totalorder %s140, %s154
      %p156 = scmp.eq.s32.totalorder %s22, 0
      %p157 = por %p155, %p156
      %s159 = sadd.s32 %s158, 1
      %p162 = scmp.eq.s32.totalorder %s16, 3
      %p163 = scmp.ne.s32.totalorder %s158, %s160
      %p164 = scmp.eq.s32.totalorder %s16, 0
      %p165 = por %p163, %p164
      %p166 = scmp.ne.s32.totalorder %s158, %s160
      %p167 = scmp.eq.s32.totalorder %s21, 3
      %p168 = por %p166, %p167
      %p169 = scmp.ne.s32.totalorder %s160, %s161
      %p170 = scmp.eq.s32.totalorder %s21, 0
      %p171 = por %p169, %p170
      %p172 = scmp.ne.s32.totalorder %s160, %s161
      %p173 = scmp.eq.s32.totalorder %s22, 3
      %p174 = por %p172, %p173
      %p176 = scmp.ne.s32.totalorder %s161, %s175
      %p177 = scmp.eq.s32.totalorder %s22, 0
      %p178 = por %p176, %p177
      %s180 = sadd.s32 %s179, 1
      %p183 = scmp.eq.s32.totalorder %s16, 3
      %p184 = scmp.ne.s32.totalorder %s179, %s181
      %p185 = scmp.eq.s32.totalorder %s16, 0
      %p186 = por %p184, %p185
      %p187 = scmp.ne.s32.totalorder %s179, %s181
      %p188 = scmp.eq.s32.totalorder %s21, 3
      %p189 = por %p187, %p188
      %p190 = scmp.ne.s32.totalorder %s181, %s182
      %p191 = scmp.eq.s32.totalorder %s21, 0
      %p192 = por %p190, %p191
      %p193 = scmp.ne.s32.totalorder %s181, %s182
      %p194 = scmp.eq.s32.totalorder %s22, 3
      %p195 = por %p193, %p194
      %p197 = scmp.ne.s32.totalorder %s182, %s196
      %p198 = scmp.eq.s32.totalorder %s22, 0
      %p199 = por %p197, %p198
      %s201 = sadd.s32 %s200, 1
      %p204 = scmp.eq.s32.totalorder %s16, 3
      %p205 = scmp.ne.s32.totalorder %s200, %s202
      %p206 = scmp.eq.s32.totalorder %s16, 0
      %p207 = por %p205, %p206
      %p208 = scmp.ne.s32.totalorder %s200, %s202
      %p209 = scmp.eq.s32.totalorder %s21, 3
      %p210 = por %p208, %p209
      %p211 = scmp.ne.s32.totalorder %s202, %s203
      %p212 = scmp.eq.s32.totalorder %s21, 0
      %p213 = por %p211, %p212
      %p214 = scmp.ne.s32.totalorder %s202, %s203
      %p215 = scmp.eq.s32.totalorder %s22, 3
      %p216 = por %p214, %p215
      %p218 = scmp.ne.s32.totalorder %s203, %s217
      %p219 = scmp.eq.s32.totalorder %s22, 0
      %p220 = por %p218, %p219
      %s221 = ssub.s32 %s23, %s35
      %p222 = scmp.eq.s32.totalorder %s221, 0
      %s224 = sadd.s32 %s223, 1
      %s225 = scalar_select %p222, %s223, %s224
      %p228 = pneg %p222
      %p229 = scmp.eq.s32.totalorder %s16, 3
      %p230 = por %p228, %p229
      %p231 = scmp.ne.s32.totalorder %s223, %s226
      %p232 = scmp.eq.s32.totalorder %s16, 0
      %p233 = por %p231, %p232
      %p234 = scmp.ne.s32.totalorder %s223, %s226
      %p235 = scmp.eq.s32.totalorder %s21, 3
      %p236 = por %p234, %p235
      %p237 = scmp.ne.s32.totalorder %s226, %s227
      %p238 = scmp.eq.s32.totalorder %s21, 0
      %p239 = por %p237, %p238
      %p240 = scmp.ne.s32.totalorder %s226, %s227
      %p241 = scmp.eq.s32.totalorder %s22, 3
      %p242 = por %p240, %p241
      %p244 = scmp.ne.s32.totalorder %s227, %s243
      %p245 = scmp.eq.s32.totalorder %s22, 0
      %p246 = por %p244, %p245
      %p247 = scmp.le.s32.totalorder 1, %s16
      %p248 = scmp.lt.s32.totalorder %s16, 5
      %p249 = pnand %p247, %p248
      %p250 = pneg %p249
      // Predicated region
      $region9: #{siamese_forward.1} parent=5 // pred_check
        _
      $region10: #{siamese_forward.1} parent=5 // pred_check_branch
        %252 = sbr.rel (%p249) target = $region12
      $region11: #{siamese_forward.1} parent=5 // pred_region
        %s253 = ssub.s32 %s16, 1
        // Predicated region
        $region13: #{siamese_forward.1} parent=11 // pred_check
          %p254 = pneg %p129
        $region14: #{siamese_forward.1} parent=11 // pred_check_branch
          %256 = sbr.rel (%p254) target = $region16
        $region15: #{siamese_forward.1} parent=11 // pred_region
          _
        $region16: #{siamese_forward.1} parent=11 // pred_fallthru
          _
        // Predicated region
        $region17: #{siamese_forward.1} parent=11 // pred_check
          %p257 = pneg %p150
        $region18: #{siamese_forward.1} parent=11 // pred_check_branch
          %259 = sbr.rel (%p257) target = $region20
        $region19: #{siamese_forward.1} parent=11 // pred_region
          _
        $region20: #{siamese_forward.1} parent=11 // pred_fallthru
          _
        // Predicated region
        $region21: #{siamese_forward.1} parent=11 // pred_check
          %p260 = pneg %p171
        $region22: #{siamese_forward.1} parent=11 // pred_check_branch
          %262 = sbr.rel (%p260) target = $region24
        $region23: #{siamese_forward.1} parent=11 // pred_region
          _
        $region24: #{siamese_forward.1} parent=11 // pred_fallthru
          _
        // Predicated region
        $region25: #{siamese_forward.1} parent=11 // pred_check
          %p263 = pneg %p192
        $region26: #{siamese_forward.1} parent=11 // pred_check_branch
          %265 = sbr.rel (%p263) target = $region28
        $region27: #{siamese_forward.1} parent=11 // pred_region
          _
        $region28: #{siamese_forward.1} parent=11 // pred_fallthru
          _
        // Predicated region
        $region29: #{siamese_forward.1} parent=11 // pred_check
          %p266 = pneg %p213
        $region30: #{siamese_forward.1} parent=11 // pred_check_branch
          %268 = sbr.rel (%p266) target = $region32
        $region31: #{siamese_forward.1} parent=11 // pred_region
          _
        $region32: #{siamese_forward.1} parent=11 // pred_fallthru
          _
      $region12: #{siamese_forward.1} parent=5 // pred_fallthru
        _
      %p269 = scmp.lt.s32.totalorder %s16, 4
      // Predicated region
      $region33: #{siamese_forward.1} parent=5 // pred_check
        %p270 = pneg %p269
      $region34: #{siamese_forward.1} parent=5 // pred_check_branch
        %272 = sbr.rel (%p270) target = $region36
      $region35: #{siamese_forward.1} parent=5 // pred_region
        // Predicated region
        $region37: #{siamese_forward.1} parent=35 // pred_check
          %p273 = pneg %p48
        $region38: #{siamese_forward.1} parent=35 // pred_check_branch
          %275 = sbr.rel (%p273) target = $region40
        $region39: #{siamese_forward.1} parent=35 // pred_region
          %p276 = scmp.lt.s32.totalorder %s23, 1
          %s277 = scalar_select %p276, %s23, 1
          %s278 = smul.addr %s277, 8
          %s279 = scalar_lea.vmem %s1, %s278
        $region40: #{siamese_forward.1} parent=35 // pred_fallthru
          _
        // Predicated region
        $region41: #{siamese_forward.1} parent=35 // pred_check
          %p280 = pneg %p76
        $region42: #{siamese_forward.1} parent=35 // pred_check_branch
          %282 = sbr.rel (%p280) target = $region44
        $region43: #{siamese_forward.1} parent=35 // pred_region
          %s283 = sand.u32 %s66, 1
          %s284 = sand.u32 %s66, 1
          %s285 = smul.addr %s284, 16
          %s286 = scalar_lea.vmem [#allocation9], %s285
          %s287 = smul.u32 4, %s24
          %s288 = smul.addr %s287, 2
          %s289 = sadd.s32 %s23, %s288
          %s290 = smul.addr %s289, 4
          %s291 = scalar_lea.vmem %s2, %s290
          // Predicated region
          $region45: #{siamese_forward.1} parent=43 // pred_check
            _
          $region46: #{siamese_forward.1} parent=43 // pred_check_branch
            %293 = sbr.rel (0) target = $region48
          $region47: #{siamese_forward.1} parent=43 // pred_region
            // Predicated region
            $region49: #{siamese_forward.1} parent=47 // pred_check
              _
            $region50: #{siamese_forward.1} parent=47 // pred_check_branch
              %295 = sbr.rel target = $region52
            $region51: #{siamese_forward.1} parent=47 // pred_region
              // Predicated region
              $region64: #{siamese_forward.1} parent=51 // pred_check
                _
              $region65: #{siamese_forward.1} parent=51 // pred_check_branch
                %316 = sbr.rel (0) target = $region67
              $region66: #{siamese_forward.1} parent=51 // pred_region
                loop: start=0, step=1, limit=1
                $region68: #{siamese_forward.1} parent=66 // loop_pre_header
                  _
                $region69: #{siamese_forward.1} parent=66 // loop_header
                  %s318 = sphi 0, %s322
                  %p319 = scmp.ge.s32.totalorder %s318, 1
                  %s323 = sphi %s291, %s291
                  %s324 = sphi %s286, %s286
                $region70: #{siamese_forward.1} parent=66 // loop_header_branch
                  %321 = sbr.rel (%p319) target = $region74
                $region71: #{siamese_forward.1} parent=66 // loop_body
                  _
                $region72: #{siamese_forward.1} parent=66 // loop_footer
                  %s322 = sadd.s32 1, %s318
                $region73: #{siamese_forward.1} parent=66 // loop_footer_branch
                  %317 = sbr.rel target = $region69
                $region74: #{siamese_forward.1} parent=66 // loop_exit
                  _
                loop: start=0, step=1, limit=1
                $region75: #{siamese_forward.1} parent=66 // loop_pre_header
                  _
                $region76: #{siamese_forward.1} parent=66 // loop_header
                  %s327 = sphi 0, %s331
                  %p328 = scmp.ge.s32.totalorder %s327, 1
                  %s332 = sphi %s291, %s291
                  %s333 = sphi %s286, %s286
                $region77: #{siamese_forward.1} parent=66 // loop_header_branch
                  %330 = sbr.rel (%p328) target = $region81
                $region78: #{siamese_forward.1} parent=66 // loop_body
                  %v334 = vld [vmem:[%s332] sm:$0xf]
                  %335 = vst [vmem:[%s333] sm:$0xf] %v334
                  %v336 = vld [vmem:[%s332 + $0x8] sm:$0xf]
                  %337 = vst [vmem:[%s333 + $0x4] sm:$0xf] %v336
                  %v338 = vld [vmem:[%s332 + $0x10] sm:$0xf]
                  %339 = vst [vmem:[%s333 + $0x8] sm:$0xf] %v338
                  %v340 = vld [vmem:[%s332 + $0x18] sm:$0xf]
                  %341 = vst [vmem:[%s333 + $0xc] sm:$0xf] %v340
                $region79: #{siamese_forward.1} parent=66 // loop_footer
                  %s331 = sadd.s32 1, %s327
                $region80: #{siamese_forward.1} parent=66 // loop_footer_branch
                  %326 = sbr.rel target = $region76
                $region81: #{siamese_forward.1} parent=66 // loop_exit
                  _
              $region67: #{siamese_forward.1} parent=51 // pred_fallthru
                _
            $region52: #{siamese_forward.1} parent=47 // pred_fallthru
              _
            // Predicated region
            $region53: #{siamese_forward.1} parent=47 // pred_check
              _
            $region54: #{siamese_forward.1} parent=47 // pred_check_branch
              %297 = sbr.rel (0) target = $region56
            $region55: #{siamese_forward.1} parent=47 // pred_region
              loop: start=0, step=1, limit=1
              $region57: #{siamese_forward.1} parent=55 // loop_pre_header
                _
              $region58: #{siamese_forward.1} parent=55 // loop_header
                %s300 = sphi 0, %s304
                %p301 = scmp.ge.s32.totalorder %s300, 1
                %s305 = sphi %s291, %s291
                %s306 = sphi %s286, %s286
              $region59: #{siamese_forward.1} parent=55 // loop_header_branch
                %303 = sbr.rel (%p301) target = $region63
              $region60: #{siamese_forward.1} parent=55 // loop_body
                %v307 = vld [vmem:[%s305] sm:$0xf]
                %308 = vst [vmem:[%s306] sm:$0xf] %v307
                %v309 = vld [vmem:[%s305 + $0x8] sm:$0xf]
                %310 = vst [vmem:[%s306 + $0x4] sm:$0xf] %v309
                %v311 = vld [vmem:[%s305 + $0x10] sm:$0xf]
                %312 = vst [vmem:[%s306 + $0x8] sm:$0xf] %v311
                %v313 = vld [vmem:[%s305 + $0x18] sm:$0xf]
                %314 = vst [vmem:[%s306 + $0xc] sm:$0xf] %v313
              $region61: #{siamese_forward.1} parent=55 // loop_footer
                %s304 = sadd.s32 1, %s300
              $region62: #{siamese_forward.1} parent=55 // loop_footer_branch
                %299 = sbr.rel target = $region58
              $region63: #{siamese_forward.1} parent=55 // loop_exit
                _
            $region56: #{siamese_forward.1} parent=47 // pred_fallthru
              _
          $region48: #{siamese_forward.1} parent=43 // pred_fallthru
            _
          %342 = vnop
        $region44: #{siamese_forward.1} parent=35 // pred_fallthru
          _
        // Predicated region
        $region82: #{siamese_forward.1} parent=35 // pred_check
          %p343 = pneg %p102
        $region83: #{siamese_forward.1} parent=35 // pred_check_branch
          %345 = sbr.rel (%p343) target = $region85
        $region84: #{siamese_forward.1} parent=35 // pred_region
          %p346 = scmp.lt.s32.totalorder %s23, 1
          %s347 = scalar_select %p346, %s23, 1
          %s348 = smul.addr %s347, 4
          %s349 = scalar_lea.vmem %s3, %s348
        $region85: #{siamese_forward.1} parent=35 // pred_fallthru
          _
      $region36: #{siamese_forward.1} parent=5 // pred_fallthru
        _
      %p350 = scmp.le.s32.totalorder 1, %s16
      %p351 = scmp.lt.s32.totalorder %s16, 5
      %p352 = pnand %p350, %p351
      %p353 = pneg %p352
      // Predicated region
      $region86: #{siamese_forward.1} parent=5 // pred_check
        _
      $region87: #{siamese_forward.1} parent=5 // pred_check_branch
        %355 = sbr.rel (%p352) target = $region89
      $region88: #{siamese_forward.1} parent=5 // pred_region
        %s356 = ssub.s32 %s16, 1
        %s357 = sand.u32 %s69, 1
        %s358 = sand.u32 %s69, 1
        %s359 = smul.addr %s358, 16
        %s360 = scalar_lea.vmem [#allocation9], %s359
        // Predicated region
        $region90: #{siamese_forward.1} parent=88 // pred_check
          %p361 = pneg %p82
        $region91: #{siamese_forward.1} parent=88 // pred_check_branch
          %363 = sbr.rel (%p361) target = $region93
        $region92: #{siamese_forward.1} parent=88 // pred_region
          _
        $region93: #{siamese_forward.1} parent=88 // pred_fallthru
          _
        %p364 = scmp.lt.s32.totalorder %s25, 1
        %s365 = scalar_select %p364, %s25, 1
        %s366 = smul.addr %s365, 8
        %s367 = scalar_lea.vmem %s1, %s366
        %p368 = pneg %p54
        %p369 = pneg %p51
        %s370 = sand.u32 %s69, 1
        %s371 = sand.u32 %s69, 1
        %s372 = smul.addr %s371, 16
        %s373 = scalar_lea.vmem [#allocation9], %s372
        %p374 = pneg %p82
        %p375 = pneg %p79
        %p376 = scmp.lt.s32.totalorder %s25, 1
        %s377 = scalar_select %p376, %s25, 1
        %s378 = smul.addr %s377, 4
        %s379 = scalar_lea.vmem %s3, %s378
        %p380 = pneg %p108
        %p381 = pneg %p105
        %p382 = pneg %p129
        %p383 = pneg %p126
        %p384 = pneg %p150
        %p385 = pneg %p147
        %p386 = pneg %p171
        %p387 = pneg %p168
        %p388 = pneg %p192
        %p389 = pneg %p189
        %p390 = pneg %p213
        %p391 = pneg %p210
        %p392 = pneg %p239
        %p393 = pneg %p236
        %p394 = scmp.lt.s32.totalorder %s25, 1
        %s395 = scalar_select %p394, %s25, 1
        %s396 = smul.addr %s395, 4
        %s397 = scalar_lea.vmem %s9, %s396
        %p398 = scmp.lt.s32.totalorder %s25, 1
        %s399 = scalar_select %p398, %s25, 1
        %s400 = smul.addr %s399, 8
        %s401 = scalar_lea.vmem %s1, %s400
        %s402 = smul.u32 4, %s26
        %p403 = scmp.lt.s32.totalorder %s25, 1
        %s404 = scalar_select %p403, %s25, 1
        %s405 = smul.addr %s404, 4
        %s406 = scalar_lea.vmem %s3, %s405
        %p407 = scmp.lt.s32.totalorder %s25, 1
        %s408 = scalar_select %p407, %s25, 1
        %s409 = smul.addr %s408, 4
        %s410 = scalar_lea.vmem %s9, %s409
        %p412 = scmp.eq.s32.totalorder %s26, 0
        // Predicated region
        $region94: #{siamese_forward.1} parent=88 // pred_check
          %p413 = pneg %p412
        $region95: #{siamese_forward.1} parent=88 // pred_check_branch
          %415 = sbr.rel (%p413) target = $region97
        $region96: #{siamese_forward.1} parent=88 // pred_region
          %vm416 = vcmask 261120
          %417 = vst.msk [vmem:[#allocation3] sm:$0xff] %vm416, 0.0
          %418 = vst.msk [vmem:[#allocation4] sm:$0xff] %vm416, 0.0
          %419 = vst.msk [vmem:[#allocation5] sm:$0xff] %vm416, 0.0
          %v420 = vld [vmem:[%s406] sm:$0xf]
          %v421 = vld [vmem:[%s7] sm:$0xf]
          %v422 = vld [vmem:[%s7 + $0x4] sm:$0xf]
          %v423 = vld [vmem:[%s7 + $0x8] sm:$0xf]
          %v424 = vld [vmem:[%s7 + $0xc] sm:$0xf]
          %v425 = vld [vmem:[%s8] sm:$0x1]
          %v427 = vlaneseq
          %v428 = vshrl.u32 %v427, 7
          %v429 = vsub.s32 0, %v428
          %v430 = vrot.slane %v425, %v429
          %v436 = vunpack.c.l.b16 %v421
          %v437 = vunpack.c.l.b16 %v422
          %v438 = vunpack.c.l.b16 %v423
          %v439 = vunpack.c.l.b16 %v424
          %v440 = vpack.c.b16 %v437, %v436
          %v441 = vpack.c.b16 %v439, %v438
          %v445 = vsel %vm416, %v420, 0
          %447 = vmatprep.subr.bf16.mxu0 0
          %448 = vmatpush1.bf16.msra.mxu0 %v440
          %449 = vmatprep.subr.bf16.mxu0 0
          %450 = vmatpush1.bf16.msra.mxu0 %v441
          %451 = vmatprep.subr.bf16.mxu0 0
          %452 = vmatpush1.bf16.msra.mxu0 0
          %453 = vmatprep.subr.bf16.mxu0 0
          %454 = vmatpush1.bf16.msra.mxu0 0
          %455 = vmatprep.subr.bf16.mxu0 0
          %456 = vmatpush1.bf16.msra.mxu0 0
          %457 = vmatprep.subr.bf16.mxu0 0
          %458 = vmatpush1.bf16.msra.mxu0 0
          %459 = vmatprep.subr.bf16.mxu0 0
          %460 = vmatpush1.bf16.msra.mxu0 0
          %461 = vmatprep.subr.bf16.mxu0 0
          %462 = vmatpush1.bf16.msra.mxu0 0
          %463 = vmatprep.subr.bf16.mxu0 0
          %464 = vmatpush1.bf16.msra.mxu0 0
          %465 = vmatprep.subr.bf16.mxu0 0
          %466 = vmatpush1.bf16.msra.mxu0 0
          %467 = vmatprep.subr.bf16.mxu0 0
          %468 = vmatpush1.bf16.msra.mxu0 0
          %469 = vmatprep.subr.bf16.mxu0 0
          %470 = vmatpush1.bf16.msra.mxu0 0
          %471 = vmatprep.subr.bf16.mxu0 0
          %472 = vmatpush1.bf16.msra.mxu0 0
          %473 = vmatprep.subr.bf16.mxu0 0
          %474 = vmatpush1.bf16.msra.mxu0 0
          %475 = vmatprep.subr.bf16.mxu0 0
          %476 = vmatpush1.bf16.msra.mxu0 0
          %477 = vmatprep.subr.bf16.mxu0 0
          %478 = vmatpush1.bf16.msra.mxu0 0
          %479 = vmatprep.mubr.bf16.mxu0 0
          %480 = vmatmul.mubr.bf16.gmra.mrb[0].mxu0 %v445
          %v481 = vpop.f32.mrb[0].mxu0
          %v482 = vadd.f32 %v430, %v481
          %v483 = vpop.f32.mrb[0].mxu0
          %v484 = vpop.f32.mrb[0].mxu0
          %v485 = vpop.f32.mrb[0].mxu0
          %486 = vdwg.mxu0
          %v487 = vxor.u32 %v482, 2147483648
          %v488 = vmul.f32 %v487, 1.442695
          %v489 = vpow.pop %v488
          %v490 = vadd.f32 %v489, 1.0
          %v491 = vrcp.pop %v490
          %v492 = vmul.f32 1.0, %v491
          %v493 = vtanh.pop %v482
          %495 = vrot.lane.b32.xlu0 %v493, 64
          %v496 = vpop.permute.xlu0 %495
          %v498 = vmul.f32 %v492, %v496
          %v499 = vtanh.pop %v498
          %501 = vrot.lane.b32.xlu0 %v499, 96
          %v502 = vpop.permute.xlu0 %501
          %v504 = vmul.f32 %v492, %v502
          %506 = vrot.lane.b32.xlu0 %v504, 32
          %v507 = vpop.permute.xlu0 %506
          %509 = vst.msk [vmem:[#allocation6] sm:$0xff] %vm416, %v507
        $region97: #{siamese_forward.1} parent=88 // pred_fallthru
          _
        %s510 = smul.u32 %s26, 4
        %s511 = sld [smem:[#allocation8]]
        %p512 = scmp.lt.s32.totalorder %s510, %s511
        // Predicated region
        $region98: #{siamese_forward.1} parent=88 // pred_check
          %p513 = pneg %p512
        $region99: #{siamese_forward.1} parent=88 // pred_check_branch
          %515 = sbr.rel (%p513) target = $region101
        $region100: #{siamese_forward.1} parent=88 // pred_region
          %v516 = vld [vmem:[%s360] sm:$0xf]
          %v517 = vld [vmem:[%s4] sm:$0xf]
          %v518 = vld [vmem:[%s4 + $0x4] sm:$0xf]
          %v519 = vld [vmem:[%s4 + $0x8] sm:$0xf]
          %v520 = vld [vmem:[%s4 + $0xc] sm:$0xf]
          %v521 = vld [vmem:[%s6] sm:$0x1]
          %v523 = vlaneseq
          %v524 = vshrl.u32 %v523, 7
          %v525 = vsub.s32 0, %v524
          %v526 = vrot.slane %v521, %v525
          %v532 = vunpack.c.l.b16 %v517
          %v533 = vunpack.c.l.b16 %v518
          %v534 = vunpack.c.l.b16 %v519
          %v535 = vunpack.c.l.b16 %v520
          %v536 = vpack.c.b16 %v533, %v532
          %v537 = vpack.c.b16 %v535, %v534
          %vm540 = vcmask 261120
          %v542 = vsel %vm540, %v516, 0
          %544 = vmatprep.subr.bf16.mxu0 0
          %545 = vmatpush1.bf16.msra.mxu0 %v536
          %546 = vmatprep.subr.bf16.mxu0 0
          %547 = vmatpush1.bf16.msra.mxu0 %v537
          %548 = vmatprep.subr.bf16.mxu0 0
          %549 = vmatpush1.bf16.msra.mxu0 0
          %550 = vmatprep.subr.bf16.mxu0 0
          %551 = vmatpush1.bf16.msra.mxu0 0
          %552 = vmatprep.subr.bf16.mxu0 0
          %553 = vmatpush1.bf16.msra.mxu0 0
          %554 = vmatprep.subr.bf16.mxu0 0
          %555 = vmatpush1.bf16.msra.mxu0 0
          %556 = vmatprep.subr.bf16.mxu0 0
          %557 = vmatpush1.bf16.msra.mxu0 0
          %558 = vmatprep.subr.bf16.mxu0 0
          %559 = vmatpush1.bf16.msra.mxu0 0
          %560 = vmatprep.subr.bf16.mxu0 0
          %561 = vmatpush1.bf16.msra.mxu0 0
          %562 = vmatprep.subr.bf16.mxu0 0
          %563 = vmatpush1.bf16.msra.mxu0 0
          %564 = vmatprep.subr.bf16.mxu0 0
          %565 = vmatpush1.bf16.msra.mxu0 0
          %566 = vmatprep.subr.bf16.mxu0 0
          %567 = vmatpush1.bf16.msra.mxu0 0
          %568 = vmatprep.subr.bf16.mxu0 0
          %569 = vmatpush1.bf16.msra.mxu0 0
          %570 = vmatprep.subr.bf16.mxu0 0
          %571 = vmatpush1.bf16.msra.mxu0 0
          %572 = vmatprep.subr.bf16.mxu0 0
          %573 = vmatpush1.bf16.msra.mxu0 0
          %574 = vmatprep.subr.bf16.mxu0 0
          %575 = vmatpush1.bf16.msra.mxu0 0
          %576 = vmatprep.mubr.bf16.mxu0 0
          %577 = vmatmul.mubr.bf16.gmra.mrb[0].mxu0 %v542
          %v578 = vpop.f32.mrb[0].mxu0
          %v579 = vadd.f32 %v526, %v578
          %v580 = vpop.f32.mrb[0].mxu0
          %v581 = vpop.f32.mrb[0].mxu0
          %v582 = vpop.f32.mrb[0].mxu0
          %583 = vdwg.mxu0
          %584 = vst [vmem:[#allocation2] sm:$0xff] %v579
          %s585 = scalar_lea.vmem %s360, 4 [#allocation9]
          %v586 = vld [vmem:[%s585] sm:$0xf]
          %v587 = vld [vmem:[%s4] sm:$0xf]
          %v588 = vld [vmem:[%s4 + $0x4] sm:$0xf]
          %v589 = vld [vmem:[%s4 + $0x8] sm:$0xf]
          %v590 = vld [vmem:[%s4 + $0xc] sm:$0xf]
          %v591 = vld [vmem:[%s6] sm:$0x1]
          %v593 = vlaneseq
          %v594 = vshrl.u32 %v593, 7
          %v595 = vsub.s32 0, %v594
          %v596 = vrot.slane %v591, %v595
          %v602 = vunpack.c.l.b16 %v587
          %v603 = vunpack.c.l.b16 %v588
          %v604 = vunpack.c.l.b16 %v589
          %v605 = vunpack.c.l.b16 %v590
          %v606 = vpack.c.b16 %v603, %v602
          %v607 = vpack.c.b16 %v605, %v604
          %v611 = vsel %vm540, %v586, 0
          %613 = vmatprep.subr.bf16.mxu0 0
          %614 = vmatpush1.bf16.msra.mxu0 %v606
          %615 = vmatprep.subr.bf16.mxu0 0
          %616 = vmatpush1.bf16.msra.mxu0 %v607
          %617 = vmatprep.subr.bf16.mxu0 0
          %618 = vmatpush1.bf16.msra.mxu0 0
          %619 = vmatprep.subr.bf16.mxu0 0
          %620 = vmatpush1.bf16.msra.mxu0 0
          %621 = vmatprep.subr.bf16.mxu0 0
          %622 = vmatpush1.bf16.msra.mxu0 0
          %623 = vmatprep.subr.bf16.mxu0 0
          %624 = vmatpush1.bf16.msra.mxu0 0
          %625 = vmatprep.subr.bf16.mxu0 0
          %626 = vmatpush1.bf16.msra.mxu0 0
          %627 = vmatprep.subr.bf16.mxu0 0
          %628 = vmatpush1.bf16.msra.mxu0 0
          %629 = vmatprep.subr.bf16.mxu0 0
          %630 = vmatpush1.bf16.msra.mxu0 0
          %631 = vmatprep.subr.bf16.mxu0 0
          %632 = vmatpush1.bf16.msra.mxu0 0
          %633 = vmatprep.subr.bf16.mxu0 0
          %634 = vmatpush1.bf16.msra.mxu0 0
          %635 = vmatprep.subr.bf16.mxu0 0
          %636 = vmatpush1.bf16.msra.mxu0 0
          %637 = vmatprep.subr.bf16.mxu0 0
          %638 = vmatpush1.bf16.msra.mxu0 0
          %639 = vmatprep.subr.bf16.mxu0 0
          %640 = vmatpush1.bf16.msra.mxu0 0
          %641 = vmatprep.subr.bf16.mxu0 0
          %642 = vmatpush1.bf16.msra.mxu0 0
          %643 = vmatprep.subr.bf16.mxu0 0
          %644 = vmatpush1.bf16.msra.mxu0 0
          %645 = vmatprep.mubr.bf16.mxu0 0
          %646 = vmatmul.mubr.bf16.gmra.mrb[0].mxu0 %v611
          %v647 = vpop.f32.mrb[0].mxu0
          %v648 = vadd.f32 %v596, %v647
          %v649 = vpop.f32.mrb[0].mxu0
          %v650 = vpop.f32.mrb[0].mxu0
          %v651 = vpop.f32.mrb[0].mxu0
          %652 = vdwg.mxu0
          %653 = vst [vmem:[#allocation2 + $0x8] sm:$0xff] %v648
          %s654 = scalar_lea.vmem %s360, 8 [#allocation9]
          %v655 = vld [vmem:[%s654] sm:$0xf]
          %v656 = vld [vmem:[%s4] sm:$0xf]
          %v657 = vld [vmem:[%s4 + $0x4] sm:$0xf]
          %v658 = vld [vmem:[%s4 + $0x8] sm:$0xf]
          %v659 = vld [vmem:[%s4 + $0xc] sm:$0xf]
          %v660 = vld [vmem:[%s6] sm:$0x1]
          %v662 = vlaneseq
          %v663 = vshrl.u32 %v662, 7
          %v664 = vsub.s32 0, %v663
          %v665 = vrot.slane %v660, %v664
          %v671 = vunpack.c.l.b16 %v656
          %v672 = vunpack.c.l.b16 %v657
          %v673 = vunpack.c.l.b16 %v658
          %v674 = vunpack.c.l.b16 %v659
          %v675 = vpack.c.b16 %v672, %v671
          %v676 = vpack.c.b16 %v674, %v673
          %v680 = vsel %vm540, %v655, 0
          %682 = vmatprep.subr.bf16.mxu0 0
          %683 = vmatpush1.bf16.msra.mxu0 %v675
          %684 = vmatprep.subr.bf16.mxu0 0
          %685 = vmatpush1.bf16.msra.mxu0 %v676
          %686 = vmatprep.subr.bf16.mxu0 0
          %687 = vmatpush1.bf16.msra.mxu0 0
          %688 = vmatprep.subr.bf16.mxu0 0
          %689 = vmatpush1.bf16.msra.mxu0 0
          %690 = vmatprep.subr.bf16.mxu0 0
          %691 = vmatpush1.bf16.msra.mxu0 0
          %692 = vmatprep.subr.bf16.mxu0 0
          %693 = vmatpush1.bf16.msra.mxu0 0
          %694 = vmatprep.subr.bf16.mxu0 0
          %695 = vmatpush1.bf16.msra.mxu0 0
          %696 = vmatprep.subr.bf16.mxu0 0
          %697 = vmatpush1.bf16.msra.mxu0 0
          %698 = vmatprep.subr.bf16.mxu0 0
          %699 = vmatpush1.bf16.msra.mxu0 0
          %700 = vmatprep.subr.bf16.mxu0 0
          %701 = vmatpush1.bf16.msra.mxu0 0
          %702 = vmatprep.subr.bf16.mxu0 0
          %703 = vmatpush1.bf16.msra.mxu0 0
          %704 = vmatprep.subr.bf16.mxu0 0
          %705 = vmatpush1.bf16.msra.mxu0 0
          %706 = vmatprep.subr.bf16.mxu0 0
          %707 = vmatpush1.bf16.msra.mxu0 0
          %708 = vmatprep.subr.bf16.mxu0 0
          %709 = vmatpush1.bf16.msra.mxu0 0
          %710 = vmatprep.subr.bf16.mxu0 0
          %711 = vmatpush1.bf16.msra.mxu0 0
          %712 = vmatprep.subr.bf16.mxu0 0
          %713 = vmatpush1.bf16.msra.mxu0 0
          %714 = vmatprep.mubr.bf16.mxu0 0
          %715 = vmatmul.mubr.bf16.gmra.mrb[0].mxu0 %v680
          %v716 = vpop.f32.mrb[0].mxu0
          %v717 = vadd.f32 %v665, %v716
          %v718 = vpop.f32.mrb[0].mxu0
          %v719 = vpop.f32.mrb[0].mxu0
          %v720 = vpop.f32.mrb[0].mxu0
          %721 = vdwg.mxu0
          %722 = vst [vmem:[#allocation2 + $0x10] sm:$0xff] %v717
          %s723 = scalar_lea.vmem %s360, 12 [#allocation9]
          %v724 = vld [vmem:[%s723] sm:$0xf]
          %v725 = vld [vmem:[%s4] sm:$0xf]
          %v726 = vld [vmem:[%s4 + $0x4] sm:$0xf]
          %v727 = vld [vmem:[%s4 + $0x8] sm:$0xf]
          %v728 = vld [vmem:[%s4 + $0xc] sm:$0xf]
          %v729 = vld [vmem:[%s6] sm:$0x1]
          %v731 = vlaneseq
          %v732 = vshrl.u32 %v731, 7
          %v733 = vsub.s32 0, %v732
          %v734 = vrot.slane %v729, %v733
          %v740 = vunpack.c.l.b16 %v725
          %v741 = vunpack.c.l.b16 %v726
          %v742 = vunpack.c.l.b16 %v727
          %v743 = vunpack.c.l.b16 %v728
          %v744 = vpack.c.b16 %v741, %v740
          %v745 = vpack.c.b16 %v743, %v742
          %v749 = vsel %vm540, %v724, 0
          %751 = vmatprep.subr.bf16.mxu0 0
          %752 = vmatpush1.bf16.msra.mxu0 %v744
          %753 = vmatprep.subr.bf16.mxu0 0
          %754 = vmatpush1.bf16.msra.mxu0 %v745
          %755 = vmatprep.subr.bf16.mxu0 0
          %756 = vmatpush1.bf16.msra.mxu0 0
          %757 = vmatprep.subr.bf16.mxu0 0
          %758 = vmatpush1.bf16.msra.mxu0 0
          %759 = vmatprep.subr.bf16.mxu0 0
          %760 = vmatpush1.bf16.msra.mxu0 0
          %761 = vmatprep.subr.bf16.mxu0 0
          %762 = vmatpush1.bf16.msra.mxu0 0
          %763 = vmatprep.subr.bf16.mxu0 0
          %764 = vmatpush1.bf16.msra.mxu0 0
          %765 = vmatprep.subr.bf16.mxu0 0
          %766 = vmatpush1.bf16.msra.mxu0 0
          %767 = vmatprep.subr.bf16.mxu0 0
          %768 = vmatpush1.bf16.msra.mxu0 0
          %769 = vmatprep.subr.bf16.mxu0 0
          %770 = vmatpush1.bf16.msra.mxu0 0
          %771 = vmatprep.subr.bf16.mxu0 0
          %772 = vmatpush1.bf16.msra.mxu0 0
          %773 = vmatprep.subr.bf16.mxu0 0
          %774 = vmatpush1.bf16.msra.mxu0 0
          %775 = vmatprep.subr.bf16.mxu0 0
          %776 = vmatpush1.bf16.msra.mxu0 0
          %777 = vmatprep.subr.bf16.mxu0 0
          %778 = vmatpush1.bf16.msra.mxu0 0
          %779 = vmatprep.subr.bf16.mxu0 0
          %780 = vmatpush1.bf16.msra.mxu0 0
          %781 = vmatprep.subr.bf16.mxu0 0
          %782 = vmatpush1.bf16.msra.mxu0 0
          %783 = vmatprep.mubr.bf16.mxu0 0
          %784 = vmatmul.mubr.bf16.gmra.mrb[0].mxu0 %v749
          %v785 = vpop.f32.mrb[0].mxu0
          %v786 = vadd.f32 %v734, %v785
          %v787 = vpop.f32.mrb[0].mxu0
          %v788 = vpop.f32.mrb[0].mxu0
          %v789 = vpop.f32.mrb[0].mxu0
          %790 = vdwg.mxu0
          %791 = vst [vmem:[#allocation2 + $0x18] sm:$0xff] %v786
          %v792 = vld [vmem:[%s5] sm:$0xf]
          %v793 = vld [vmem:[%s5 + $0x4] sm:$0xf]
          %v794 = vld [vmem:[%s5 + $0x8] sm:$0xf]
          %v795 = vld [vmem:[%s5 + $0xc] sm:$0xf]
          %v796 = vld [vmem:[%s401] sm:$0xff]
          %v797 = vsub.s32 %v796, 1
          %v798 = vld [vmem:[#allocation2] sm:$0xff]
          %v799 = vld [vmem:[#allocation3] sm:$0xff]
          %v800 = vpack.c.bf16 %v799, %v799
          %v805 = vunpack.c.l.b16 %v792
          %v806 = vunpack.c.l.b16 %v793
          %v807 = vunpack.c.l.b16 %v794
          %v808 = vunpack.c.l.b16 %v795
          %v809 = vpack.c.b16 %v806, %v805
          %v810 = vpack.c.b16 %v808, %v807
          %v814 = vsel %vm540, %v800, 0
          %816 = vmatprep.subr.bf16.mxu0 0
          %817 = vmatpush1.bf16.msra.mxu0 %v809
          %818 = vmatprep.subr.bf16.mxu0 0
          %819 = vmatpush1.bf16.msra.mxu0 %v810
          %820 = vmatprep.subr.bf16.mxu0 0
          %821 = vmatpush1.bf16.msra.mxu0 0
          %822 = vmatprep.subr.bf16.mxu0 0
          %823 = vmatpush1.bf16.msra.mxu0 0
          %824 = vmatprep.subr.bf16.mxu0 0
          %825 = vmatpush1.bf16.msra.mxu0 0
          %826 = vmatprep.subr.bf16.mxu0 0
          %827 = vmatpush1.bf16.msra.mxu0 0
          %828 = vmatprep.subr.bf16.mxu0 0
          %829 = vmatpush1.bf16.msra.mxu0 0
          %830 = vmatprep.subr.bf16.mxu0 0
          %831 = vmatpush1.bf16.msra.mxu0 0
          %832 = vmatprep.subr.bf16.mxu0 0
          %833 = vmatpush1.bf16.msra.mxu0 0
          %834 = vmatprep.subr.bf16.mxu0 0
          %835 = vmatpush1.bf16.msra.mxu0 0
          %836 = vmatprep.subr.bf16.mxu0 0
          %837 = vmatpush1.bf16.msra.mxu0 0
          %838 = vmatprep.subr.bf16.mxu0 0
          %839 = vmatpush1.bf16.msra.mxu0 0
          %840 = vmatprep.subr.bf16.mxu0 0
          %841 = vmatpush1.bf16.msra.mxu0 0
          %842 = vmatprep.subr.bf16.mxu0 0
          %843 = vmatpush1.bf16.msra.mxu0 0
          %844 = vmatprep.subr.bf16.mxu0 0
          %845 = vmatpush1.bf16.msra.mxu0 0
          %846 = vmatprep.subr.bf16.mxu0 0
          %847 = vmatpush1.bf16.msra.mxu0 0
          %848 = vmatprep.mubr.bf16.mxu0 0
          %849 = vmatmul.mubr.bf16.gmra.mrb[0].mxu0 %v814
          %v850 = vpop.f32.mrb[0].mxu0
          %v851 = vadd.f32 0.0, %v850
          %v852 = vpop.f32.mrb[0].mxu0
          %v853 = vpop.f32.mrb[0].mxu0
          %v854 = vpop.f32.mrb[0].mxu0
          %855 = vdwg.mxu0
          %v856 = vadd.f32 %v798, %v851
          %v857 = vxor.u32 %v856, 2147483648
          %v858 = vmul.f32 %v857, 1.442695
          %v859 = vpow.pop %v858
          %v860 = vadd.f32 %v859, 1.0
          %v861 = vrcp.pop %v860
          %v862 = vmul.f32 1.0, %v861
          %v863 = vtanh.pop %v856
          %v864 = vld [vmem:[#allocation4] sm:$0xff]
          %866 = vrot.lane.b32.xlu0 %v864, 32
          %v867 = vpop.permute.xlu0 %866
          %v869 = vmul.f32 %v862, %v867
          %871 = vrot.lane.b32.xlu0 %v863, 64
          %v872 = vpop.permute.xlu0 %871
          %v874 = vmul.f32 %v862, %v872
          %876 = vrot.lane.b32.xlu0 %v874, 32
          %v877 = vpop.permute.xlu0 %876
          %v879 = vadd.f32 %v869, %v877
          %v880 = vtanh.pop %v879
          %882 = vrot.lane.b32.xlu0 %v880, 64
          %v883 = vpop.permute.xlu0 %882
          %v885 = vmul.f32 %v862, %v883
          %887 = vrot.lane.b32.xlu0 %v879, 96
          %v888 = vpop.permute.xlu0 %887
          %890 = vst.msk [vmem:[#allocation4] sm:$0xff] %vm540, %v888
          %892 = vrot.lane.b32.xlu0 %v885, 32
          %v893 = vpop.permute.xlu0 %892
          %895 = vst.msk [vmem:[#allocation3] sm:$0xff] %vm540, %v893
          %v896 = vstv %s510
          %vm897 = vcmp.eq.s32.totalorder %v896, %v797
          %v898 = vld [vmem:[#allocation5] sm:$0xff]
          %v899 = vsel %vm897, 1, 0
          %900 = vset.pattern.permute.xlu0 0
          %901 = vperm.xlu0 %900, %v899
          %v902 = vpop.permute.xlu0 %901
          %vm903 = vcmp.eq.s32.totalorder %v902, 1
          %905 = vrot.lane.b32.xlu0 %v898, 96
          %v906 = vpop.permute.xlu0 %905
          %v908 = vsel %vm903, %v885, %v906
          %910 = vrot.lane.b32.xlu0 %v908, 32
          %v911 = vpop.permute.xlu0 %910
          %913 = vst.msk [vmem:[#allocation5] sm:$0xff] %vm540, %v911
          %s914 = scalar_lea.vmem [#allocation2], 8
          %v915 = vld [vmem:[%s914] sm:$0xff]
          %v916 = vld [vmem:[#allocation3] sm:$0xff]
          %v917 = vpack.c.bf16 %v916, %v916
          %v919 = vsel %vm540, %v917, 0
          %921 = vmatprep.subr.bf16.mxu0 0
          %922 = vmatpush1.bf16.msra.mxu0 %v809
          %923 = vmatprep.subr.bf16.mxu0 0
          %924 = vmatpush1.bf16.msra.mxu0 %v810
          %925 = vmatprep.subr.bf16.mxu0 0
          %926 = vmatpush1.bf16.msra.mxu0 0
          %927 = vmatprep.subr.bf16.mxu0 0
          %928 = vmatpush1.bf16.msra.mxu0 0
          %929 = vmatprep.subr.bf16.mxu0 0
          %930 = vmatpush1.bf16.msra.mxu0 0
          %931 = vmatprep.subr.bf16.mxu0 0
          %932 = vmatpush1.bf16.msra.mxu0 0
          %933 = vmatprep.subr.bf16.mxu0 0
          %934 = vmatpush1.bf16.msra.mxu0 0
          %935 = vmatprep.subr.bf16.mxu0 0
          %936 = vmatpush1.bf16.msra.mxu0 0
          %937 = vmatprep.subr.bf16.mxu0 0
          %938 = vmatpush1.bf16.msra.mxu0 0
          %939 = vmatprep.subr.bf16.mxu0 0
          %940 = vmatpush1.bf16.msra.mxu0 0
          %941 = vmatprep.subr.bf16.mxu0 0
          %942 = vmatpush1.bf16.msra.mxu0 0
          %943 = vmatprep.subr.bf16.mxu0 0
          %944 = vmatpush1.bf16.msra.mxu0 0
          %945 = vmatprep.subr.bf16.mxu0 0
          %946 = vmatpush1.bf16.msra.mxu0 0
          %947 = vmatprep.subr.bf16.mxu0 0
          %948 = vmatpush1.bf16.msra.mxu0 0
          %949 = vmatprep.subr.bf16.mxu0 0
          %950 = vmatpush1.bf16.msra.mxu0 0
          %951 = vmatprep.subr.bf16.mxu0 0
          %952 = vmatpush1.bf16.msra.mxu0 0
          %953 = vmatprep.mubr.bf16.mxu0 0
          %954 = vmatmul.mubr.bf16.gmra.mrb[0].mxu0 %v919
          %v955 = vpop.f32.mrb[0].mxu0
          %v956 = vadd.f32 0.0, %v955
          %v957 = vpop.f32.mrb[0].mxu0
          %v958 = vpop.f32.mrb[0].mxu0
          %v959 = vpop.f32.mrb[0].mxu0
          %960 = vdwg.mxu0
          %v961 = vadd.f32 %v915, %v956
          %v962 = vxor.u32 %v961, 2147483648
          %v963 = vmul.f32 %v962, 1.442695
          %v964 = vpow.pop %v963
          %v965 = vadd.f32 %v964, 1.0
          %v966 = vrcp.pop %v965
          %v967 = vmul.f32 1.0, %v966
          %v968 = vtanh.pop %v961
          %v969 = vld [vmem:[#allocation4] sm:$0xff]
          %971 = vrot.lane.b32.xlu0 %v969, 32
          %v972 = vpop.permute.xlu0 %971
          %v974 = vmul.f32 %v967, %v972
          %976 = vrot.lane.b32.xlu0 %v968, 64
          %v977 = vpop.permute.xlu0 %976
          %v979 = vmul.f32 %v967, %v977
          %981 = vrot.lane.b32.xlu0 %v979, 32
          %v982 = vpop.permute.xlu0 %981
          %v984 = vadd.f32 %v974, %v982
          %v985 = vtanh.pop %v984
          %987 = vrot.lane.b32.xlu0 %v985, 64
          %v988 = vpop.permute.xlu0 %987
          %v990 = vmul.f32 %v967, %v988
          %992 = vrot.lane.b32.xlu0 %v984, 96
          %v993 = vpop.permute.xlu0 %992
          %995 = vst.msk [vmem:[#allocation4] sm:$0xff] %vm540, %v993
          %997 = vrot.lane.b32.xlu0 %v990, 32
          %v998 = vpop.permute.xlu0 %997
          %1000 = vst.msk [vmem:[#allocation3] sm:$0xff] %vm540, %v998
          %s1001 = sadd.s32 %s510, 1
          %v1002 = vstv %s1001
          %vm1003 = vcmp.eq.s32.totalorder %v1002, %v797
          %v1004 = vld [vmem:[#allocation5] sm:$0xff]
          %v1005 = vsel %vm1003, 1, 0
          %1006 = vset.pattern.permute.xlu0 0
          %1007 = vperm.xlu0 %1006, %v1005
          %v1008 = vpop.permute.xlu0 %1007
          %vm1009 = vcmp.eq.s32.totalorder %v1008, 1
          %1011 = vrot.lane.b32.xlu0 %v1004, 96
          %v1012 = vpop.permute.xlu0 %1011
          %v1014 = vsel %vm1009, %v990, %v1012
          %1016 = vrot.lane.b32.xlu0 %v1014, 32
          %v1017 = vpop.permute.xlu0 %1016
          %1019 = vst.msk [vmem:[#allocation5] sm:$0xff] %vm540, %v1017
          %s1020 = scalar_lea.vmem [#allocation2], 16
          %v1021 = vld [vmem:[%s1020] sm:$0xff]
          %v1022 = vld [vmem:[#allocation3] sm:$0xff]
          %v1023 = vpack.c.bf16 %v1022, %v1022
          %v1025 = vsel %vm540, %v1023, 0
          %1027 = vmatprep.subr.bf16.mxu0 0
          %1028 = vmatpush1.bf16.msra.mxu0 %v809
          %1029 = vmatprep.subr.bf16.mxu0 0
          %1030 = vmatpush1.bf16.msra.mxu0 %v810
          %1031 = vmatprep.subr.bf16.mxu0 0
          %1032 = vmatpush1.bf16.msra.mxu0 0
          %1033 = vmatprep.subr.bf16.mxu0 0
          %1034 = vmatpush1.bf16.msra.mxu0 0
          %1035 = vmatprep.subr.bf16.mxu0 0
          %1036 = vmatpush1.bf16.msra.mxu0 0
          %1037 = vmatprep.subr.bf16.mxu0 0
          %1038 = vmatpush1.bf16.msra.mxu0 0
          %1039 = vmatprep.subr.bf16.mxu0 0
          %1040 = vmatpush1.bf16.msra.mxu0 0
          %1041 = vmatprep.subr.bf16.mxu0 0
          %1042 = vmatpush1.bf16.msra.mxu0 0
          %1043 = vmatprep.subr.bf16.mxu0 0
          %1044 = vmatpush1.bf16.msra.mxu0 0
          %1045 = vmatprep.subr.bf16.mxu0 0
          %1046 = vmatpush1.bf16.msra.mxu0 0
          %1047 = vmatprep.subr.bf16.mxu0 0
          %1048 = vmatpush1.bf16.msra.mxu0 0
          %1049 = vmatprep.subr.bf16.mxu0 0
          %1050 = vmatpush1.bf16.msra.mxu0 0
          %1051 = vmatprep.subr.bf16.mxu0 0
          %1052 = vmatpush1.bf16.msra.mxu0 0
          %1053 = vmatprep.subr.bf16.mxu0 0
          %1054 = vmatpush1.bf16.msra.mxu0 0
          %1055 = vmatprep.subr.bf16.mxu0 0
          %1056 = vmatpush1.bf16.msra.mxu0 0
          %1057 = vmatprep.subr.bf16.mxu0 0
          %1058 = vmatpush1.bf16.msra.mxu0 0
          %1059 = vmatprep.mubr.bf16.mxu0 0
          %1060 = vmatmul.mubr.bf16.gmra.mrb[0].mxu0 %v1025
          %v1061 = vpop.f32.mrb[0].mxu0
          %v1062 = vadd.f32 0.0, %v1061
          %v1063 = vpop.f32.mrb[0].mxu0
          %v1064 = vpop.f32.mrb[0].mxu0
          %v1065 = vpop.f32.mrb[0].mxu0
          %1066 = vdwg.mxu0
          %v1067 = vadd.f32 %v1021, %v1062
          %v1068 = vxor.u32 %v1067, 2147483648
          %v1069 = vmul.f32 %v1068, 1.442695
          %v1070 = vpow.pop %v1069
          %v1071 = vadd.f32 %v1070, 1.0
          %v1072 = vrcp.pop %v1071
          %v1073 = vmul.f32 1.0, %v1072
          %v1074 = vtanh.pop %v1067
          %v1075 = vld [vmem:[#allocation4] sm:$0xff]
          %1077 = vrot.lane.b32.xlu0 %v1075, 32
          %v1078 = vpop.permute.xlu0 %1077
          %v1080 = vmul.f32 %v1073, %v1078
          %1082 = vrot.lane.b32.xlu0 %v1074, 64
          %v1083 = vpop.permute.xlu0 %1082
          %v1085 = vmul.f32 %v1073, %v1083
          %1087 = vrot.lane.b32.xlu0 %v1085, 32
          %v1088 = vpop.permute.xlu0 %1087
          %v1090 = vadd.f32 %v1080, %v1088
          %v1091 = vtanh.pop %v1090
          %1093 = vrot.lane.b32.xlu0 %v1091, 64
          %v1094 = vpop.permute.xlu0 %1093
          %v1096 = vmul.f32 %v1073, %v1094
          %1098 = vrot.lane.b32.xlu0 %v1090, 96
          %v1099 = vpop.permute.xlu0 %1098
          %1101 = vst.msk [vmem:[#allocation4] sm:$0xff] %vm540, %v1099
          %1103 = vrot.lane.b32.xlu0 %v1096, 32
          %v1104 = vpop.permute.xlu0 %1103
          %1106 = vst.msk [vmem:[#allocation3] sm:$0xff] %vm540, %v1104
          %s1107 = sadd.s32 %s510, 2
          %v1108 = vstv %s1107
          %vm1109 = vcmp.eq.s32.totalorder %v1108, %v797
          %v1110 = vld [vmem:[#allocation5] sm:$0xff]
          %v1111 = vsel %vm1109, 1, 0
          %1112 = vset.pattern.permute.xlu0 0
          %1113 = vperm.xlu0 %1112, %v1111
          %v1114 = vpop.permute.xlu0 %1113
          %vm1115 = vcmp.eq.s32.totalorder %v1114, 1
          %1117 = vrot.lane.b32.xlu0 %v1110, 96
          %v1118 = vpop.permute.xlu0 %1117
          %v1120 = vsel %vm1115, %v1096, %v1118
          %1122 = vrot.lane.b32.xlu0 %v1120, 32
          %v1123 = vpop.permute.xlu0 %1122
          %1125 = vst.msk [vmem:[#allocation5] sm:$0xff] %vm540, %v1123
          %s1126 = scalar_lea.vmem [#allocation2], 24
          %v1127 = vld [vmem:[%s1126] sm:$0xff]
          %v1128 = vld [vmem:[#allocation3] sm:$0xff]
          %v1129 = vpack.c.bf16 %v1128, %v1128
          %v1131 = vsel %vm540, %v1129, 0
          %1133 = vmatprep.subr.bf16.mxu0 0
          %1134 = vmatpush1.bf16.msra.mxu0 %v809
          %1135 = vmatprep.subr.bf16.mxu0 0
          %1136 = vmatpush1.bf16.msra.mxu0 %v810
          %1137 = vmatprep.subr.bf16.mxu0 0
          %1138 = vmatpush1.bf16.msra.mxu0 0
          %1139 = vmatprep.subr.bf16.mxu0 0
          %1140 = vmatpush1.bf16.msra.mxu0 0
          %1141 = vmatprep.subr.bf16.mxu0 0
          %1142 = vmatpush1.bf16.msra.mxu0 0
          %1143 = vmatprep.subr.bf16.mxu0 0
          %1144 = vmatpush1.bf16.msra.mxu0 0
          %1145 = vmatprep.subr.bf16.mxu0 0
          %1146 = vmatpush1.bf16.msra.mxu0 0
          %1147 = vmatprep.subr.bf16.mxu0 0
          %1148 = vmatpush1.bf16.msra.mxu0 0
          %1149 = vmatprep.subr.bf16.mxu0 0
          %1150 = vmatpush1.bf16.msra.mxu0 0
          %1151 = vmatprep.subr.bf16.mxu0 0
          %1152 = vmatpush1.bf16.msra.mxu0 0
          %1153 = vmatprep.subr.bf16.mxu0 0
          %1154 = vmatpush1.bf16.msra.mxu0 0
          %1155 = vmatprep.subr.bf16.mxu0 0
          %1156 = vmatpush1.bf16.msra.mxu0 0
          %1157 = vmatprep.subr.bf16.mxu0 0
          %1158 = vmatpush1.bf16.msra.mxu0 0
          %1159 = vmatprep.subr.bf16.mxu0 0
          %1160 = vmatpush1.bf16.msra.mxu0 0
          %1161 = vmatprep.subr.bf16.mxu0 0
          %1162 = vmatpush1.bf16.msra.mxu0 0
          %1163 = vmatprep.subr.bf16.mxu0 0
          %1164 = vmatpush1.bf16.msra.mxu0 0
          %1165 = vmatprep.mubr.bf16.mxu0 0
          %1166 = vmatmul.mubr.bf16.gmra.mrb[0].mxu0 %v1131
          %v1167 = vpop.f32.mrb[0].mxu0
          %v1168 = vadd.f32 0.0, %v1167
          %v1169 = vpop.f32.mrb[0].mxu0
          %v1170 = vpop.f32.mrb[0].mxu0
          %v1171 = vpop.f32.mrb[0].mxu0
          %1172 = vdwg.mxu0
          %v1173 = vadd.f32 %v1127, %v1168
          %v1174 = vxor.u32 %v1173, 2147483648
          %v1175 = vmul.f32 %v1174, 1.442695
          %v1176 = vpow.pop %v1175
          %v1177 = vadd.f32 %v1176, 1.0
          %v1178 = vrcp.pop %v1177
          %v1179 = vmul.f32 1.0, %v1178
          %v1180 = vtanh.pop %v1173
          %v1181 = vld [vmem:[#allocation4] sm:$0xff]
          %1183 = vrot.lane.b32.xlu0 %v1181, 32
          %v1184 = vpop.permute.xlu0 %1183
          %v1186 = vmul.f32 %v1179, %v1184
          %1188 = vrot.lane.b32.xlu0 %v1180, 64
          %v1189 = vpop.permute.xlu0 %1188
          %v1191 = vmul.f32 %v1179, %v1189
          %1193 = vrot.lane.b32.xlu0 %v1191, 32
          %v1194 = vpop.permute.xlu0 %1193
          %v1196 = vadd.f32 %v1186, %v1194
          %v1197 = vtanh.pop %v1196
          %1199 = vrot.lane.b32.xlu0 %v1197, 64
          %v1200 = vpop.permute.xlu0 %1199
          %v1202 = vmul.f32 %v1179, %v1200
          %1204 = vrot.lane.b32.xlu0 %v1196, 96
          %v1205 = vpop.permute.xlu0 %1204
          %1207 = vst.msk [vmem:[#allocation4] sm:$0xff] %vm540, %v1205
          %1209 = vrot.lane.b32.xlu0 %v1202, 32
          %v1210 = vpop.permute.xlu0 %1209
          %1212 = vst.msk [vmem:[#allocation3] sm:$0xff] %vm540, %v1210
          %s1213 = sadd.s32 %s510, 3
          %v1214 = vstv %s1213
          %vm1215 = vcmp.eq.s32.totalorder %v1214, %v797
          %v1216 = vld [vmem:[#allocation5] sm:$0xff]
          %v1217 = vsel %vm1215, 1, 0
          %1218 = vset.pattern.permute.xlu0 0
          %1219 = vperm.xlu0 %1218, %v1217
          %v1220 = vpop.permute.xlu0 %1219
          %vm1221 = vcmp.eq.s32.totalorder %v1220, 1
          %1223 = vrot.lane.b32.xlu0 %v1216, 96
          %v1224 = vpop.permute.xlu0 %1223
          %v1226 = vsel %vm1221, %v1202, %v1224
          %1228 = vrot.lane.b32.xlu0 %v1226, 32
          %v1229 = vpop.permute.xlu0 %1228
          %1231 = vst.msk [vmem:[#allocation5] sm:$0xff] %vm540, %v1229
        $region101: #{siamese_forward.1} parent=88 // pred_fallthru
          _
        %p1232 = scmp.eq.s32.totalorder %s26, 1
        // Predicated region
        $region102: #{siamese_forward.1} parent=88 // pred_check
          %p1233 = pneg %p1232
        $region103: #{siamese_forward.1} parent=88 // pred_check_branch
          %1235 = sbr.rel (%p1233) target = $region105
        $region104: #{siamese_forward.1} parent=88 // pred_region
          %v1236 = vld [vmem:[#allocation5] sm:$0xff]
          %v1237 = vld [vmem:[#allocation6] sm:$0xff]
          %v1239 = vrot.slane %v1236, 4
          %v1241 = vsub.f32 %v1236, %v1239
          %v1243 = vrot.slane %v1237, 4
          %v1245 = vsub.f32 %v1237, %v1243
          %v1246 = vmul.f32 %v1241, %v1241
          %vm1247 = vcmask 257024
          %v1248 = vsel %vm1247, %v1246, 0.0
          %1249 = vadd.xlane.f32.xlu0 %v1248
          %v1250 = vpop.xlane.xlu0 %1249
          %v1251 = vmul.f32 %v1245, %v1245
          %v1252 = vsel %vm1247, %v1251, 0.0
          %1253 = vadd.xlane.f32.xlu0 %v1252
          %v1254 = vpop.xlane.xlu0 %1253
          %v1255 = vadd.f32 %v1250, %v1254
          %v1256 = vrsqrt.pop %v1255
          %v1257 = vmul.f32 %v1255, %v1256
          %vm1258 = vcmp.eq.f32.partialorder %v1255, inf
          %v1259 = vsel %vm1258, %v1255, %v1257
          %vm1260 = vcmp.eq.f32.partialorder %v1255, 0.0
          %v1261 = vand.u32 %v1255, 2147483648
          %v1262 = vsel %vm1260, %v1261, %v1259
          %v1263 = vmul.f32 %v1236, %v1236
          %v1264 = vsel %vm1247, %v1263, 0.0
          %1265 = vadd.xlane.f32.xlu0 %v1264
          %v1266 = vpop.xlane.xlu0 %1265
          %v1267 = vmul.f32 %v1237, %v1237
          %v1268 = vsel %vm1247, %v1267, 0.0
          %1269 = vadd.xlane.f32.xlu0 %v1268
          %v1270 = vpop.xlane.xlu0 %1269
          %v1271 = vadd.f32 %v1266, %v1270
          %v1272 = vrsqrt.pop %v1271
          %v1273 = vmul.f32 %v1271, %v1272
          %vm1274 = vcmp.eq.f32.partialorder %v1271, inf
          %v1275 = vsel %vm1274, %v1271, %v1273
          %vm1276 = vcmp.eq.f32.partialorder %v1271, 0.0
          %v1277 = vand.u32 %v1271, 2147483648
          %v1278 = vsel %vm1276, %v1277, %v1275
          %vm1279 = vcmask 261124
          %v1280 = vsel %vm1279, %v1263, 0.0
          %1281 = vadd.xlane.f32.xlu0 %v1280
          %v1282 = vpop.xlane.xlu0 %1281
          %v1283 = vsel %vm1279, %v1267, 0.0
          %1284 = vadd.xlane.f32.xlu0 %v1283
          %v1285 = vpop.xlane.xlu0 %1284
          %v1286 = vadd.f32 %v1282, %v1285
          %v1287 = vrsqrt.pop %v1286
          %v1288 = vmul.f32 %v1286, %v1287
          %vm1289 = vcmp.eq.f32.partialorder %v1286, inf
          %v1290 = vsel %vm1289, %v1286, %v1288
          %vm1291 = vcmp.eq.f32.partialorder %v1286, 0.0
          %v1292 = vand.u32 %v1286, 2147483648
          %v1293 = vsel %vm1291, %v1292, %v1290
          %v1295 = vrot.slane %v1293, 4
          %v1297 = vadd.f32 %v1278, %v1295
          %v1298 = vrcp.pop %v1297
          %v1299 = vmul.f32 %v1262, %v1298
          %vm1300 = vcmask 3072
          %1301 = vst.msk [vmem:[%s410] sm:$0xf] %vm1300, %v1299
        $region105: #{siamese_forward.1} parent=88 // pred_fallthru
          _
        %p1302 = scmp.lt.s32.totalorder %s25, 1
        %s1303 = scalar_select %p1302, %s25, 1
        %s1304 = smul.addr %s1303, 4
        %s1305 = scalar_lea.vmem %s9, %s1304
        // Predicated region
        $region106: #{siamese_forward.1} parent=88 // pred_check
          %p1306 = pneg %p236
        $region107: #{siamese_forward.1} parent=88 // pred_check_branch
          %1308 = sbr.rel (%p1306) target = $region109
        $region108: #{siamese_forward.1} parent=88 // pred_region
          _
        $region109: #{siamese_forward.1} parent=88 // pred_fallthru
          _
      $region89: #{siamese_forward.1} parent=5 // pred_fallthru
        _
      %p1309 = scmp.le.s32.totalorder 2, %s16
      // Predicated region
      $region110: #{siamese_forward.1} parent=5 // pred_check
        %p1310 = pneg %p1309
      $region111: #{siamese_forward.1} parent=5 // pred_check_branch
        %1312 = sbr.rel (%p1310) target = $region113
      $region112: #{siamese_forward.1} parent=5 // pred_region
        %s1313 = ssub.s32 %s16, 2
        // Predicated region
        $region114: #{siamese_forward.1} parent=112 // pred_check
          %p1314 = pneg %p242
        $region115: #{siamese_forward.1} parent=112 // pred_check_branch
          %1316 = sbr.rel (%p1314) target = $region117
        $region116: #{siamese_forward.1} parent=112 // pred_region
          %p1317 = scmp.lt.s32.totalorder %s27, 1
          %s1318 = scalar_select %p1317, %s27, 1
          %s1319 = smul.addr %s1318, 4
          %s1320 = scalar_lea.vmem %s9, %s1319
        $region117: #{siamese_forward.1} parent=112 // pred_fallthru
          _
      $region113: #{siamese_forward.1} parent=5 // pred_fallthru
        _
    $region6: #{siamese_forward.1} parent=1 // loop_footer
      %s20 = sadd.s32 1, %s16
    $region7: #{siamese_forward.1} parent=1 // loop_footer_branch
      %15 = sbr.rel target = $region3
    $region8: #{siamese_forward.1} parent=1 // loop_exit
      _

</llo_original>
